<compile_context>
chip_gen: v5e
topology: v5e:2x2
jax: 0.10.0
libtpu: 0.0.40
codegen_flags: <defaults>
</compile_context>

<pallas_src>
import functools

import jax
import jax.numpy as jnp
from jax.experimental import pallas as pl
from jax.experimental.pallas import tpu as pltpu


# ----------------------------------------------------------------------------
# Pallas kernel: one grid step == one tile of TM pixels (lane axis).
#   p_ref     [KP, TM]   bf16  im2col patches of [x ; h] (zero-padded K)
#   w_ref     [4CH, KP]  bf16  norm-scale-folded, stacked conv weights
#   c_ref     [CH, TM]   f32   current cell state
#   shift_ref [4CH, 1]   f32   folded conv-bias + norm shift
#   csc_ref   [CH, 1]    f32   cell_norm scale
#   csh_ref   [CH, 1]    f32   cell_norm shift
#   h_ref     [CH, TM]   f32   h_next (out)
#   cn_ref    [CH, TM]   f32   c_next (out)
# ----------------------------------------------------------------------------
def _clstm_kernel(p_ref, w_ref, c_ref, shift_ref, csc_ref, csh_ref,
                  h_ref, cn_ref, *, CH):
    # combined_conv = h_norm(h_conv(h)) + input_norm(input_conv(x))
    # (scales folded into w_ref, biases/shifts folded into shift_ref)
    combined = jnp.dot(w_ref[...], p_ref[...],
                       preferred_element_type=jnp.float32) + shift_ref[...]

    # i, f, o are contiguous rows [0, 3*CH) -> single sigmoid; g is tanh.
    ifo = jax.nn.sigmoid(combined[:3 * CH, :])
    g = jnp.tanh(combined[3 * CH:, :])
    i = ifo[:CH, :]
    f = ifo[CH:2 * CH, :]
    o = ifo[2 * CH:, :]

    c_cur = c_ref[...]
    c_next = f * c_cur + i * g
    # h_next = o * cell_norm(tanh(c_next))
    h_next = o * (jnp.tanh(c_next) * csc_ref[...] + csh_ref[...])

    cn_ref[...] = c_next
    h_ref[...] = h_next


# ----------------------------------------------------------------------------
# Wrapper: norm folding, x/h merge, im2col, lane-dense layout, pallas_call.
# ----------------------------------------------------------------------------
def conv_lstm_cell_pallas(x, h_cur, c_cur, params, timestep, *, tile_m=256):
    B, H, W, CIN = x.shape
    CH = h_cur.shape[-1]
    KH, KW = params["wx"].shape[0], params["wx"].shape[1]
    ph, pw = KH // 2, KW // 2
    eps = 1e-5

    CALL = CIN + CH
    K = KH * KW * CALL
    KP = ((K + 127) // 128) * 128          # pad contraction dim to lane mult.
    M = B * H * W

    tm = min(tile_m, M)
    assert M % tm == 0 and tm % 128 == 0, "pixel count must tile by 128"
    assert CH % 8 == 0, "hidden_dim must be a multiple of 8"

    # Fold RecurrentNorm2d (eval mode, per-timestep running stats) + conv bias
    # into per-output-channel scale / shift vectors.
    def fold(norm, conv_bias, t):
        scale = norm["weight"] / jnp.sqrt(norm["running_var"][t] + eps)
        shift = norm["bias"] - norm["running_mean"][t] * scale + conv_bias * scale
        return scale, shift

    sx, shift_x = fold(params["input_norm"], params["bx"], timestep)
    sh, shift_h = fold(params["h_norm"], params["bh"], timestep)
    csc, csh = fold(params["cell_norm"], jnp.zeros((CH,), jnp.float32), timestep)

    # Fold the norm scales into the conv weights and stack x/h weights along
    # the input-channel axis (same ordering as the concatenated [x, h] input).
    wx = params["wx"] * sx                                   # [KH,KW,CIN,4CH]
    wh = params["wh"] * sh                                   # [KH,KW,CH, 4CH]
    w = jnp.concatenate([wx, wh], axis=2)                    # [KH,KW,CALL,4CH]
    w_flat = w.reshape(K, 4 * CH)
    w_flat = jnp.pad(w_flat, ((0, KP - K), (0, 0)))
    w_t = w_flat.T.astype(jnp.bfloat16)                      # [4CH, KP]

    shift_comb = (shift_x + shift_h).reshape(4 * CH, 1).astype(jnp.float32)
    csc = csc.reshape(CH, 1).astype(jnp.float32)
    csh = csh.reshape(CH, 1).astype(jnp.float32)

    # im2col in glue: "same"-padded cross-correlation patches of [x ; h].
    xh = jnp.concatenate([x, h_cur], axis=-1)                # [B,H,W,CALL]
    xhp = jnp.pad(xh, ((0, 0), (ph, ph), (pw, pw), (0, 0)))
    patches = jnp.concatenate(
        [xhp[:, dy:dy + H, dx:dx + W, :]
         for dy in range(KH) for dx in range(KW)], axis=-1)  # [B,H,W,K]
    p_flat = patches.reshape(M, K)
    p_flat = jnp.pad(p_flat, ((0, 0), (0, KP - K)))
    p_t = p_flat.T.astype(jnp.bfloat16)                      # [KP, M]

    c_t = c_cur.reshape(M, CH).T.astype(jnp.float32)         # [CH, M]

    kernel = functools.partial(_clstm_kernel, CH=CH)

    h_t, cn_t = pl.pallas_call(
        kernel,
        out_shape=(jax.ShapeDtypeStruct((CH, M), jnp.float32),
                   jax.ShapeDtypeStruct((CH, M), jnp.float32)),
        grid=(M // tm,),
        in_specs=[
            pl.BlockSpec((KP, tm), lambda m: (0, m)),
            pl.BlockSpec((4 * CH, KP), lambda m: (0, 0)),
            pl.BlockSpec((CH, tm), lambda m: (0, m)),
            pl.BlockSpec((4 * CH, 1), lambda m: (0, 0)),
            pl.BlockSpec((CH, 1), lambda m: (0, 0)),
            pl.BlockSpec((CH, 1), lambda m: (0, 0)),
        ],
        out_specs=(
            pl.BlockSpec((CH, tm), lambda m: (0, m)),
            pl.BlockSpec((CH, tm), lambda m: (0, m)),
        ),
        compiler_params=pltpu.CompilerParams(
            dimension_semantics=("parallel",)),
    )(p_t, w_t, c_t, shift_comb, csc, csh)

    h_next = h_t.T.reshape(B, H, W, CH)
    c_next = cn_t.T.reshape(B, H, W, CH)
    return h_next, c_next


# ----------------------------------------------------------------------------
# Pure-JAX reference (mirrors the PyTorch forward) for a correctness check.
# ----------------------------------------------------------------------------
def conv_lstm_cell_ref(x, h_cur, c_cur, params, timestep):
    eps = 1e-5

    def conv(inp, w, b):
        out = jax.lax.conv_general_dilated(
            inp, w, window_strides=(1, 1), padding="SAME",
            dimension_numbers=("NHWC", "HWIO", "NHWC"))
        return out + b

    def rnorm(xx, norm, t):
        scale = norm["weight"] / jnp.sqrt(norm["running_var"][t] + eps)
        return (xx - norm["running_mean"][t]) * scale + norm["bias"]

    combined = (rnorm(conv(h_cur, params["wh"], params["bh"]),
                      params["h_norm"], timestep)
                + rnorm(conv(x, params["wx"], params["bx"]),
                        params["input_norm"], timestep))
    cc_i, cc_f, cc_o, cc_g = jnp.split(combined, 4, axis=-1)
    i = jax.nn.sigmoid(cc_i)
    f = jax.nn.sigmoid(cc_f)
    o = jax.nn.sigmoid(cc_o)
    g = jnp.tanh(cc_g)
    c_next = f * c_cur + i * g
    h_next = o * rnorm(jnp.tanh(c_next), params["cell_norm"], timestep)
    return h_next, c_next


# ----------------------------------------------------------------------------
# Deterministic synthetic parameters (shapes per ConvLSTMCell.__init__).
# ----------------------------------------------------------------------------
def make_params(key, input_dim, hidden_dim, num_timesteps, kernel_size):
    kh, kw = kernel_size
    ks = jax.random.split(key, 12)

    def norm(k0, k1, c):
        return {
            "weight": jnp.full((c,), 0.1, jnp.float32),
            "bias": jnp.zeros((c,), jnp.float32),
            "running_mean": 0.05 * jax.random.normal(k0, (num_timesteps, c),
                                                     jnp.float32),
            "running_var": 1.0 + 0.1 * jax.random.uniform(
                k1, (num_timesteps, c), jnp.float32),
        }

    return {
        "wx": 0.1 * jax.random.normal(ks[0], (kh, kw, input_dim,
                                               4 * hidden_dim), jnp.float32),
        "bx": 0.1 * jax.random.normal(ks[1], (4 * hidden_dim,), jnp.float32),
        "wh": 0.1 * jax.random.normal(ks[2], (kh, kw, hidden_dim,
                                               4 * hidden_dim), jnp.float32),
        "bh": 0.1 * jax.random.normal(ks[3], (4 * hidden_dim,), jnp.float32),
        "input_norm": norm(ks[4], ks[5], 4 * hidden_dim),
        "h_norm": norm(ks[6], ks[7], 4 * hidden_dim),
        "cell_norm": norm(ks[8], ks[9], hidden_dim),
    }


if __name__ == "__main__":
    B, CIN, H, W = 2, 4, 16, 16
    HIDDEN, T = 32, 8
    KSIZE = (3, 3)
    TIMESTEP = 3

    key = jax.random.PRNGKey(0)
    k_x, k_h, k_c, k_p = jax.random.split(key, 4)

    x = jax.random.normal(k_x, (B, H, W, CIN), jnp.float32)
    h0 = jax.random.normal(k_h, (B, H, W, HIDDEN), jnp.float32)
    c0 = jax.random.normal(k_c, (B, H, W, HIDDEN), jnp.float32)
    params = make_params(k_p, CIN, HIDDEN, T, KSIZE)

    h_next, c_next = conv_lstm_cell_pallas(x, h0, c0, params, TIMESTEP)
    jax.block_until_ready((h_next, c_next))

    h_ref, c_ref = conv_lstm_cell_ref(x, h0, c0, params, TIMESTEP)
    # bf16 matmul operands (f32 accumulation) -> relaxed tolerance vs f32 ref.
    assert jnp.allclose(h_next, h_ref, atol=2e-2, rtol=2e-2), "h_next mismatch"
    assert jnp.allclose(c_next, c_ref, atol=2e-2, rtol=2e-2), "c_next mismatch"

    print("KERNEL_OK")
</pallas_src>

<mosaic_0001>
module attributes {stable_mosaic.version = 11 : i64} {
  func.func @_clstm_kernel(%arg0: i32, %arg1: memref<384x256xbf16, #tpu.memory_space<vmem>>, %arg2: memref<128x384xbf16, #tpu.memory_space<vmem>>, %arg3: memref<32x256xf32, #tpu.memory_space<vmem>>, %arg4: memref<128x1xf32, #tpu.memory_space<vmem>>, %arg5: memref<32x1xf32, #tpu.memory_space<vmem>>, %arg6: memref<32x1xf32, #tpu.memory_space<vmem>>, %arg7: memref<32x256xf32, #tpu.memory_space<vmem>>, %arg8: memref<32x256xf32, #tpu.memory_space<vmem>>) attributes {dimension_semantics = [#tpu.dimension_semantics<parallel>], iteration_bounds = array<i64: 2>, scalar_prefetch = 0 : i64, scratch_operands = 0 : i64, tpu.core_type = #tpu.core_type<tc>, window_params = [{transform_indices = @transform_0, window_bounds = array<i64: 384, 256>}, {pipeline_mode = #tpu.pipeline_mode<synchronous>, transform_indices = @transform_1, window_bounds = array<i64: 128, 384>}, {transform_indices = @transform_2, window_bounds = array<i64: 32, 256>}, {pipeline_mode = #tpu.pipeline_mode<synchronous>, transform_indices = @transform_3, window_bounds = array<i64: 128, 1>}, {pipeline_mode = #tpu.pipeline_mode<synchronous>, transform_indices = @transform_4, window_bounds = array<i64: 32, 1>}, {pipeline_mode = #tpu.pipeline_mode<synchronous>, transform_indices = @transform_5, window_bounds = array<i64: 32, 1>}, {transform_indices = @transform_6, window_bounds = array<i64: 32, 256>}, {transform_indices = @transform_7, window_bounds = array<i64: 32, 256>}]} {
    %c0 = arith.constant 0 : index
    %c0_0 = arith.constant 0 : index
    %0 = vector.load %arg2[%c0, %c0_0] : memref<128x384xbf16, #tpu.memory_space<vmem>>, vector<128x384xbf16>
    %c0_1 = arith.constant 0 : index
    %c0_2 = arith.constant 0 : index
    %1 = vector.load %arg1[%c0_1, %c0_2] : memref<384x256xbf16, #tpu.memory_space<vmem>>, vector<384x256xbf16>
    %cst = arith.constant dense<0.000000e+00> : vector<128x256xf32>
    %2 = tpu.matmul %0, %1, %cst {dimension_numbers = #tpu.dot_dimension_numbers<[1], [0], [0], [1], [0, 0, 1, 1], [], []>} : vector<128x384xbf16>, vector<384x256xbf16>, vector<128x256xf32> -> vector<128x256xf32>
    %c0_3 = arith.constant 0 : index
    %c0_4 = arith.constant 0 : index
    %3 = vector.load %arg4[%c0_3, %c0_4] : memref<128x1xf32, #tpu.memory_space<vmem>>, vector<128x1xf32>
    %4 = vector.broadcast %3 : vector<128x1xf32> to vector<128x256xf32>
    %5 = arith.addf %2, %4 : vector<128x256xf32>
    %6 = vector.extract_strided_slice %5 {offsets = [0, 0], sizes = [96, 256], strides = [1, 1]} : vector<128x256xf32> to vector<96x256xf32>
    %7 = arith.negf %6 : vector<96x256xf32>
    %8 = math.exp %7 : vector<96x256xf32>
    %cst_5 = arith.constant 1.000000e+00 : f32
    %9 = vector.broadcast %cst_5 : f32 to vector<96x256xf32>
    %10 = arith.addf %9, %8 : vector<96x256xf32>
    %11 = arith.divf %9, %10 : vector<96x256xf32>
    %12 = vector.extract_strided_slice %5 {offsets = [96, 0], sizes = [32, 256], strides = [1, 1]} : vector<128x256xf32> to vector<32x256xf32>
    %13 = math.tanh %12 : vector<32x256xf32>
    %14 = vector.extract_strided_slice %11 {offsets = [0, 0], sizes = [32, 256], strides = [1, 1]} : vector<96x256xf32> to vector<32x256xf32>
    %15 = vector.extract_strided_slice %11 {offsets = [32, 0], sizes = [32, 256], strides = [1, 1]} : vector<96x256xf32> to vector<32x256xf32>
    %16 = vector.extract_strided_slice %11 {offsets = [64, 0], sizes = [32, 256], strides = [1, 1]} : vector<96x256xf32> to vector<32x256xf32>
    %c0_6 = arith.constant 0 : index
    %c0_7 = arith.constant 0 : index
    %17 = vector.load %arg3[%c0_6, %c0_7] : memref<32x256xf32, #tpu.memory_space<vmem>>, vector<32x256xf32>
    %18 = arith.mulf %15, %17 : vector<32x256xf32>
    %19 = arith.mulf %14, %13 : vector<32x256xf32>
    %20 = arith.addf %18, %19 : vector<32x256xf32>
    %21 = math.tanh %20 : vector<32x256xf32>
    %c0_8 = arith.constant 0 : index
    %c0_9 = arith.constant 0 : index
    %22 = vector.load %arg5[%c0_8, %c0_9] : memref<32x1xf32, #tpu.memory_space<vmem>>, vector<32x1xf32>
    %23 = vector.broadcast %22 : vector<32x1xf32> to vector<32x256xf32>
    %24 = arith.mulf %21, %23 : vector<32x256xf32>
    %c0_10 = arith.constant 0 : index
    %c0_11 = arith.constant 0 : index
    %25 = vector.load %arg6[%c0_10, %c0_11] : memref<32x1xf32, #tpu.memory_space<vmem>>, vector<32x1xf32>
    %26 = vector.broadcast %25 : vector<32x1xf32> to vector<32x256xf32>
    %27 = arith.addf %24, %26 : vector<32x256xf32>
    %28 = arith.mulf %16, %27 : vector<32x256xf32>
    %c0_12 = arith.constant 0 : index
    %c0_13 = arith.constant 0 : index
    %29 = vector.load %arg8[%c0_12, %c0_13] : memref<32x256xf32, #tpu.memory_space<vmem>>, vector<32x256xf32>
    tpu.vector_store %arg8[%c0_12, %c0_13], %20 {strides = array<i32>} : memref<32x256xf32, #tpu.memory_space<vmem>>, vector<32x256xf32>,
    %c0_14 = arith.constant 0 : index
    %c0_15 = arith.constant 0 : index
    %30 = vector.load %arg7[%c0_14, %c0_15] : memref<32x256xf32, #tpu.memory_space<vmem>>, vector<32x256xf32>
    tpu.vector_store %arg7[%c0_14, %c0_15], %28 {strides = array<i32>} : memref<32x256xf32, #tpu.memory_space<vmem>>, vector<32x256xf32>,
    return
  }
  func.func @transform_0(%arg0: i32) -> (i32, i32) {
    %c0_i32 = arith.constant 0 : i32
    %c0_i32_0 = arith.constant 0 : i32
    return %c0_i32, %arg0 : i32, i32
  }
  func.func @transform_1(%arg0: i32) -> (i32, i32) {
    %c0_i32 = arith.constant 0 : i32
    %c0_i32_0 = arith.constant 0 : i32
    %c0_i32_1 = arith.constant 0 : i32
    return %c0_i32, %c0_i32_0 : i32, i32
  }
  func.func @transform_2(%arg0: i32) -> (i32, i32) {
    %c0_i32 = arith.constant 0 : i32
    %c0_i32_0 = arith.constant 0 : i32
    return %c0_i32, %arg0 : i32, i32
  }
  func.func @transform_3(%arg0: i32) -> (i32, i32) {
    %c0_i32 = arith.constant 0 : i32
    %c0_i32_0 = arith.constant 0 : i32
    %c0_i32_1 = arith.constant 0 : i32
    return %c0_i32, %c0_i32_0 : i32, i32
  }
  func.func @transform_4(%arg0: i32) -> (i32, i32) {
    %c0_i32 = arith.constant 0 : i32
    %c0_i32_0 = arith.constant 0 : i32
    %c0_i32_1 = arith.constant 0 : i32
    return %c0_i32, %c0_i32_0 : i32, i32
  }
  func.func @transform_5(%arg0: i32) -> (i32, i32) {
    %c0_i32 = arith.constant 0 : i32
    %c0_i32_0 = arith.constant 0 : i32
    %c0_i32_1 = arith.constant 0 : i32
    return %c0_i32, %c0_i32_0 : i32, i32
  }
  func.func @transform_6(%arg0: i32) -> (i32, i32) {
    %c0_i32 = arith.constant 0 : i32
    %c0_i32_0 = arith.constant 0 : i32
    return %c0_i32, %arg0 : i32, i32
  }
  func.func @transform_7(%arg0: i32) -> (i32, i32) {
    %c0_i32 = arith.constant 0 : i32
    %c0_i32_0 = arith.constant 0 : i32
    return %c0_i32, %arg0 : i32, i32
  }
}

</mosaic_0001>

<llo_original>
// kernel: tpu_custom_call.1
$region0: #{tpu_custom_call.1}
  #allocation0 [shape = 'u32[]', space=smem, size = 0x4, offset = 0x4, fixed_abs, tag = 'smem constant byte address 0x4 - core index']
  #allocation1 [shape = 'u32[72,128]{1,0:T(1,128)}', space=vmem, size = 0x9000, scoped, tag = 'internal scratch']
  %s0 = inlined_call_operand.hbm [shape: bf16[384,512], index: 0, kind: input, shape index: {}]
  %s1 = inlined_call_operand.hbm [shape: bf16[128,384], index: 1, kind: input, shape index: {}]
  %s2 = inlined_call_operand.vmem [shape: f32[32,512], index: 2, kind: input, shape index: {}]
  %s3 = inlined_call_operand.vmem [shape: f32[128,1], index: 3, kind: input, shape index: {}]
  %s4 = inlined_call_operand.vmem [shape: f32[32,1], index: 4, kind: input, shape index: {}]
  %s5 = inlined_call_operand.vmem [shape: f32[32,1], index: 5, kind: input, shape index: {}]
  %s6 = inlined_call_operand.hbm [shape: f32[32,512], index: 6, kind: output, shape index: {0}]
  %s7 = inlined_call_operand.hbm [shape: f32[32,512], index: 7, kind: output, shape index: {1}]
  %8 = xla_tuple %s6, %s7
  %s9 = sld [smem:[#allocation0]]
  $region96: #{tpu_custom_call.1} parent=0
    _
  %s11 = ssub.s32 1, %s9
  %s12 = scalar_select 0, %s11, %s9
  $region1: #{tpu_custom_call.1} parent=0
    #allocation2 [shape = 'u8[393216]{0}', space=vmem, size = 0x60000, scoped, tag = 'input window, operand 0']
    #allocation3 [shape = 's32[2]{0}', space=sflag, size = 0x8, scoped, tag = 'scoped memory for tpu_custom_call.1']
    #allocation4 [shape = 's32[2]{0}', space=sflag, size = 0x8, scoped, tag = 'scoped memory for tpu_custom_call.1']
    #allocation5 [shape = 'u8[98304]{0}', space=vmem, size = 0x18000, scoped, tag = 'input window, operand 1, single buffered']
    #allocation6 [shape = 's32[1]{0}', space=sflag, size = 0x4, scoped, tag = 'scoped memory for tpu_custom_call.1']
    #allocation7 [shape = 'u8[65536]{0}', space=vmem, size = 0x10000, scoped, tag = 'input window, operand 2']
    #allocation8 [shape = 'u8[65536]{0}', space=vmem, size = 0x10000, scoped, tag = 'output window, operand 0']
    #allocation9 [shape = 'u8[65536]{0}', space=vmem, size = 0x10000, scoped, tag = 'output window, operand 1']
    #allocation10 [shape = 's32[2]{0}', space=sflag, size = 0x8, scoped, tag = 'scoped memory for tpu_custom_call.1']
    %13 = vsyncpa [#allocation3], 0
    %s14 = scalar_lea.sflag [#allocation3], 1
    %15 = vsyncpa %s14, 0
    %16 = vsyncpa [#allocation6], 0
    %17 = vsyncpa [#allocation4], 0
    %s18 = scalar_lea.sflag [#allocation4], 1
    %19 = vsyncpa %s18, 0
    %20 = vsyncpa [#allocation10], 0
    %s21 = scalar_lea.sflag [#allocation10], 1
    %22 = vsyncpa %s21, 0
    loop: start=0, step=1, limit=4
    $region2: #{tpu_custom_call.1} parent=1 // loop_pre_header
      _
    $region3: #{tpu_custom_call.1} parent=1 // loop_header
      %s24 = sphi 0, %s28
      %p25 = scmp.ge.s32.totalorder %s24, 4
      %s34 = sphi 0, %s36
      %s37 = sphi 0, %s34
      %s38 = sphi 0, %s37
      %s54 = sphi 0, %s38
      %s58 = sphi 0, %s58
      %s60 = sphi 0, %s58
      %s61 = sphi 0, %s60
      %s75 = sphi 0, %s61
      %s81 = sphi 0, %s83
      %s84 = sphi 0, %s81
      %s85 = sphi 0, %s84
      %s101 = sphi 0, %s85
      %s105 = sphi 0, %s105
      %s107 = sphi 0, %s105
      %s108 = sphi 0, %s107
      %s122 = sphi 0, %s108
      %s126 = sphi 0, %s126
      %s128 = sphi 0, %s126
      %s129 = sphi 0, %s128
      %s143 = sphi 0, %s129
      %s147 = sphi 0, %s147
      %s149 = sphi 0, %s147
      %s150 = sphi 0, %s149
      %s164 = sphi 0, %s150
      %s170 = sphi 0, %s172
      %s173 = sphi 0, %s170
      %s174 = sphi 0, %s173
      %s190 = sphi 0, %s174
      %s196 = sphi 0, %s198
      %s199 = sphi 0, %s196
      %s200 = sphi 0, %s199
      %s216 = sphi 0, %s200
    $region4: #{tpu_custom_call.1} parent=1 // loop_header_branch
      %27 = sbr.rel (%p25) target = $region8
    $region5: #{tpu_custom_call.1} parent=1 // loop_body
      %s29 = ssub.s32 %s24, 1
      %s30 = ssub.s32 %s24, 2
      %s31 = sadd.s32 %s24, 1
      %s32 = ssub.s32 %s24, %s31
      %p33 = scmp.eq.s32.totalorder %s32, 0
      %s35 = sadd.s32 %s34, 1
      %s36 = scalar_select %p33, %s34, %s35
      %p39 = pneg %p33
      %p40 = scmp.eq.s32.totalorder %s24, 1
      %p41 = por %p39, %p40
      %p42 = scmp.ne.s32.totalorder %s34, %s37
      %p43 = scmp.eq.s32.totalorder %s24, 0
      %p44 = por %p42, %p43
      %p45 = scmp.ne.s32.totalorder %s34, %s37
      %p46 = scmp.eq.s32.totalorder %s29, 1
      %p47 = por %p45, %p46
      %p48 = scmp.ne.s32.totalorder %s37, %s38
      %p49 = scmp.eq.s32.totalorder %s29, 0
      %p50 = por %p48, %p49
      %p51 = scmp.ne.s32.totalorder %s37, %s38
      %p52 = scmp.eq.s32.totalorder %s30, 1
      %p53 = por %p51, %p52
      %p55 = scmp.ne.s32.totalorder %s38, %s54
      %p56 = scmp.eq.s32.totalorder %s30, 0
      %p57 = por %p55, %p56
      %s59 = sadd.s32 %s58, 1
      %p62 = scmp.eq.s32.totalorder %s24, 1
      %p63 = scmp.ne.s32.totalorder %s58, %s60
      %p64 = scmp.eq.s32.totalorder %s24, 0
      %p65 = por %p63, %p64
      %p66 = scmp.ne.s32.totalorder %s58, %s60
      %p67 = scmp.eq.s32.totalorder %s29, 1
      %p68 = por %p66, %p67
      %p69 = scmp.ne.s32.totalorder %s60, %s61
      %p70 = scmp.eq.s32.totalorder %s29, 0
      %p71 = por %p69, %p70
      %p72 = scmp.ne.s32.totalorder %s60, %s61
      %p73 = scmp.eq.s32.totalorder %s30, 1
      %p74 = por %p72, %p73
      %p76 = scmp.ne.s32.totalorder %s61, %s75
      %p77 = scmp.eq.s32.totalorder %s30, 0
      %p78 = por %p76, %p77
      %s79 = ssub.s32 %s24, %s31
      %p80 = scmp.eq.s32.totalorder %s79, 0
      %s82 = sadd.s32 %s81, 1
      %s83 = scalar_select %p80, %s81, %s82
      %p86 = pneg %p80
      %p87 = scmp.eq.s32.totalorder %s24, 1
      %p88 = por %p86, %p87
      %p89 = scmp.ne.s32.totalorder %s81, %s84
      %p90 = scmp.eq.s32.totalorder %s24, 0
      %p91 = por %p89, %p90
      %p92 = scmp.ne.s32.totalorder %s81, %s84
      %p93 = scmp.eq.s32.totalorder %s29, 1
      %p94 = por %p92, %p93
      %p95 = scmp.ne.s32.totalorder %s84, %s85
      %p96 = scmp.eq.s32.totalorder %s29, 0
      %p97 = por %p95, %p96
      %p98 = scmp.ne.s32.totalorder %s84, %s85
      %p99 = scmp.eq.s32.totalorder %s30, 1
      %p100 = por %p98, %p99
      %p102 = scmp.ne.s32.totalorder %s85, %s101
      %p103 = scmp.eq.s32.totalorder %s30, 0
      %p104 = por %p102, %p103
      %s106 = sadd.s32 %s105, 1
      %p109 = scmp.eq.s32.totalorder %s24, 1
      %p110 = scmp.ne.s32.totalorder %s105, %s107
      %p111 = scmp.eq.s32.totalorder %s24, 0
      %p112 = por %p110, %p111
      %p113 = scmp.ne.s32.totalorder %s105, %s107
      %p114 = scmp.eq.s32.totalorder %s29, 1
      %p115 = por %p113, %p114
      %p116 = scmp.ne.s32.totalorder %s107, %s108
      %p117 = scmp.eq.s32.totalorder %s29, 0
      %p118 = por %p116, %p117
      %p119 = scmp.ne.s32.totalorder %s107, %s108
      %p120 = scmp.eq.s32.totalorder %s30, 1
      %p121 = por %p119, %p120
      %p123 = scmp.ne.s32.totalorder %s108, %s122
      %p124 = scmp.eq.s32.totalorder %s30, 0
      %p125 = por %p123, %p124
      %s127 = sadd.s32 %s126, 1
      %p130 = scmp.eq.s32.totalorder %s24, 1
      %p131 = scmp.ne.s32.totalorder %s126, %s128
      %p132 = scmp.eq.s32.totalorder %s24, 0
      %p133 = por %p131, %p132
      %p134 = scmp.ne.s32.totalorder %s126, %s128
      %p135 = scmp.eq.s32.totalorder %s29, 1
      %p136 = por %p134, %p135
      %p137 = scmp.ne.s32.totalorder %s128, %s129
      %p138 = scmp.eq.s32.totalorder %s29, 0
      %p139 = por %p137, %p138
      %p140 = scmp.ne.s32.totalorder %s128, %s129
      %p141 = scmp.eq.s32.totalorder %s30, 1
      %p142 = por %p140, %p141
      %p144 = scmp.ne.s32.totalorder %s129, %s143
      %p145 = scmp.eq.s32.totalorder %s30, 0
      %p146 = por %p144, %p145
      %s148 = sadd.s32 %s147, 1
      %p151 = scmp.eq.s32.totalorder %s24, 1
      %p152 = scmp.ne.s32.totalorder %s147, %s149
      %p153 = scmp.eq.s32.totalorder %s24, 0
      %p154 = por %p152, %p153
      %p155 = scmp.ne.s32.totalorder %s147, %s149
      %p156 = scmp.eq.s32.totalorder %s29, 1
      %p157 = por %p155, %p156
      %p158 = scmp.ne.s32.totalorder %s149, %s150
      %p159 = scmp.eq.s32.totalorder %s29, 0
      %p160 = por %p158, %p159
      %p161 = scmp.ne.s32.totalorder %s149, %s150
      %p162 = scmp.eq.s32.totalorder %s30, 1
      %p163 = por %p161, %p162
      %p165 = scmp.ne.s32.totalorder %s150, %s164
      %p166 = scmp.eq.s32.totalorder %s30, 0
      %p167 = por %p165, %p166
      %s168 = ssub.s32 %s24, %s31
      %p169 = scmp.eq.s32.totalorder %s168, 0
      %s171 = sadd.s32 %s170, 1
      %s172 = scalar_select %p169, %s170, %s171
      %p175 = pneg %p169
      %p176 = scmp.eq.s32.totalorder %s24, 1
      %p177 = por %p175, %p176
      %p178 = scmp.ne.s32.totalorder %s170, %s173
      %p179 = scmp.eq.s32.totalorder %s24, 0
      %p180 = por %p178, %p179
      %p181 = scmp.ne.s32.totalorder %s170, %s173
      %p182 = scmp.eq.s32.totalorder %s29, 1
      %p183 = por %p181, %p182
      %p184 = scmp.ne.s32.totalorder %s173, %s174
      %p185 = scmp.eq.s32.totalorder %s29, 0
      %p186 = por %p184, %p185
      %p187 = scmp.ne.s32.totalorder %s173, %s174
      %p188 = scmp.eq.s32.totalorder %s30, 1
      %p189 = por %p187, %p188
      %p191 = scmp.ne.s32.totalorder %s174, %s190
      %p192 = scmp.eq.s32.totalorder %s30, 0
      %p193 = por %p191, %p192
      %s194 = ssub.s32 %s24, %s31
      %p195 = scmp.eq.s32.totalorder %s194, 0
      %s197 = sadd.s32 %s196, 1
      %s198 = scalar_select %p195, %s196, %s197
      %p201 = pneg %p195
      %p202 = scmp.eq.s32.totalorder %s24, 1
      %p203 = por %p201, %p202
      %p204 = scmp.ne.s32.totalorder %s196, %s199
      %p205 = scmp.eq.s32.totalorder %s24, 0
      %p206 = por %p204, %p205
      %p207 = scmp.ne.s32.totalorder %s196, %s199
      %p208 = scmp.eq.s32.totalorder %s29, 1
      %p209 = por %p207, %p208
      %p210 = scmp.ne.s32.totalorder %s199, %s200
      %p211 = scmp.eq.s32.totalorder %s29, 0
      %p212 = por %p210, %p211
      %p213 = scmp.ne.s32.totalorder %s199, %s200
      %p214 = scmp.eq.s32.totalorder %s30, 1
      %p215 = por %p213, %p214
      %p217 = scmp.ne.s32.totalorder %s200, %s216
      %p218 = scmp.eq.s32.totalorder %s30, 0
      %p219 = por %p217, %p218
      %p220 = scmp.le.s32.totalorder 1, %s24
      %p221 = scmp.lt.s32.totalorder %s24, 3
      %p222 = pnand %p220, %p221
      %p223 = pneg %p222
      // Predicated region
      $region9: #{tpu_custom_call.1} parent=5 // pred_check
        _
      $region10: #{tpu_custom_call.1} parent=5 // pred_check_branch
        %225 = sbr.rel (%p222) target = $region12
      $region11: #{tpu_custom_call.1} parent=5 // pred_region
        %s226 = ssub.s32 %s24, 1
        // Predicated region
        $region13: #{tpu_custom_call.1} parent=11 // pred_check
          %p227 = pneg %p71
        $region14: #{tpu_custom_call.1} parent=11 // pred_check_branch
          %229 = sbr.rel (%p227) target = $region16
        $region15: #{tpu_custom_call.1} parent=11 // pred_region
          %231 = vsyncadd [#allocation6], 0
          %s232 = sshll.u32 %s1, 4
          %s233 = int_to_ptr.hbm [resolvable:$true] %s232
          %s234 = sshll.u32 [#allocation5], 4
          %s235 = int_to_ptr.vmem [resolvable:$true] %s234
          %240 = dma.hbm_to_vmem [thread:$0]  %s233, 3072, %s235, [#allocation6], 192, 192, 12
        $region16: #{tpu_custom_call.1} parent=11 // pred_fallthru
          _
        // Predicated region
        $region17: #{tpu_custom_call.1} parent=11 // pred_check
          %p241 = pneg %p118
        $region18: #{tpu_custom_call.1} parent=11 // pred_check_branch
          %243 = sbr.rel (%p241) target = $region20
        $region19: #{tpu_custom_call.1} parent=11 // pred_region
          _
        $region20: #{tpu_custom_call.1} parent=11 // pred_fallthru
          _
        // Predicated region
        $region21: #{tpu_custom_call.1} parent=11 // pred_check
          %p244 = pneg %p139
        $region22: #{tpu_custom_call.1} parent=11 // pred_check_branch
          %246 = sbr.rel (%p244) target = $region24
        $region23: #{tpu_custom_call.1} parent=11 // pred_region
          _
        $region24: #{tpu_custom_call.1} parent=11 // pred_fallthru
          _
        // Predicated region
        $region25: #{tpu_custom_call.1} parent=11 // pred_check
          %p247 = pneg %p160
        $region26: #{tpu_custom_call.1} parent=11 // pred_check_branch
          %249 = sbr.rel (%p247) target = $region28
        $region27: #{tpu_custom_call.1} parent=11 // pred_region
          _
        $region28: #{tpu_custom_call.1} parent=11 // pred_fallthru
          _
      $region12: #{tpu_custom_call.1} parent=5 // pred_fallthru
        _
      %p250 = scmp.lt.s32.totalorder %s24, 2
      // Predicated region
      $region29: #{tpu_custom_call.1} parent=5 // pred_check
        %p251 = pneg %p250
      $region30: #{tpu_custom_call.1} parent=5 // pred_check_branch
        %253 = sbr.rel (%p251) target = $region32
      $region31: #{tpu_custom_call.1} parent=5 // pred_region
        // Predicated region
        $region33: #{tpu_custom_call.1} parent=31 // pred_check
          %p254 = pneg %p44
        $region34: #{tpu_custom_call.1} parent=31 // pred_check_branch
          %256 = sbr.rel (%p254) target = $region36
        $region35: #{tpu_custom_call.1} parent=31 // pred_region
          %s257 = sand.u32 %s34, 1
          %s258 = scalar_lea.sflag [#allocation3], %s257
          %s259 = sand.u32 %s34, 1
          %s260 = smul.addr %s259, 384
          %s261 = scalar_lea.vmem [#allocation2], %s260
          %s262 = smul.u32 2, %s24
          %264 = vsyncadd %s258, 0
          %s265 = smul.addr %s262, 4
          %s266 = scalar_lea.hbm %s0, %s265
          %s267 = sshll.u32 %s266, 4
          %s268 = int_to_ptr.hbm [resolvable:$true] %s267
          %s269 = sshll.u32 %s261, 4
          %s270 = int_to_ptr.vmem [resolvable:$true] %s269
          %275 = dma.hbm_to_vmem [thread:$0]  %s268, 6144, %s270, %s258, 256, 128, 8
        $region36: #{tpu_custom_call.1} parent=31 // pred_fallthru
          _
        // Predicated region
        $region37: #{tpu_custom_call.1} parent=31 // pred_check
          %p276 = pneg %p91
        $region38: #{tpu_custom_call.1} parent=31 // pred_check_branch
          %278 = sbr.rel (%p276) target = $region40
        $region39: #{tpu_custom_call.1} parent=31 // pred_region
          %s279 = sand.u32 %s81, 1
          %s280 = sand.u32 %s81, 1
          %s281 = smul.addr %s280, 64
          %s282 = scalar_lea.vmem [#allocation7], %s281
          %s283 = smul.u32 2, %s24
          %s284 = smul.addr %s283, 8
          %s285 = scalar_lea.vmem %s2, %s284
          // Predicated region
          $region41: #{tpu_custom_call.1} parent=39 // pred_check
            _
          $region42: #{tpu_custom_call.1} parent=39 // pred_check_branch
            %287 = sbr.rel (0) target = $region44
          $region43: #{tpu_custom_call.1} parent=39 // pred_region
            // Predicated region
            $region45: #{tpu_custom_call.1} parent=43 // pred_check
              _
            $region46: #{tpu_custom_call.1} parent=43 // pred_check_branch
              %289 = sbr.rel (0) target = $region48
            $region47: #{tpu_custom_call.1} parent=43 // pred_region
              loop: start=0, step=1, limit=1
              $region49: #{tpu_custom_call.1} parent=47 // loop_pre_header
                _
              $region50: #{tpu_custom_call.1} parent=47 // loop_header
                %s291 = sphi 0, %s295
                %p292 = scmp.ge.s32.totalorder %s291, 1
                %s296 = sphi %s285, %s285
                %s297 = sphi %s282, %s282
              $region51: #{tpu_custom_call.1} parent=47 // loop_header_branch
                %294 = sbr.rel (%p292) target = $region55
              $region52: #{tpu_custom_call.1} parent=47 // loop_body
                %v298 = vld [vmem:[%s296] sm:$0xff]
                %299 = vst [vmem:[%s297] sm:$0xff] %v298
                %v300 = vld [vmem:[%s296 + $0x8] sm:$0xff]
                %301 = vst [vmem:[%s297 + $0x8] sm:$0xff] %v300
                %v302 = vld [vmem:[%s296 + $0x20] sm:$0xff]
                %303 = vst [vmem:[%s297 + $0x10] sm:$0xff] %v302
                %v304 = vld [vmem:[%s296 + $0x28] sm:$0xff]
                %305 = vst [vmem:[%s297 + $0x18] sm:$0xff] %v304
                %v306 = vld [vmem:[%s296 + $0x40] sm:$0xff]
                %307 = vst [vmem:[%s297 + $0x20] sm:$0xff] %v306
                %v308 = vld [vmem:[%s296 + $0x48] sm:$0xff]
                %309 = vst [vmem:[%s297 + $0x28] sm:$0xff] %v308
                %v310 = vld [vmem:[%s296 + $0x60] sm:$0xff]
                %311 = vst [vmem:[%s297 + $0x30] sm:$0xff] %v310
                %v312 = vld [vmem:[%s296 + $0x68] sm:$0xff]
                %313 = vst [vmem:[%s297 + $0x38] sm:$0xff] %v312
              $region53: #{tpu_custom_call.1} parent=47 // loop_footer
                %s295 = sadd.s32 1, %s291
              $region54: #{tpu_custom_call.1} parent=47 // loop_footer_branch
                %290 = sbr.rel target = $region50
              $region55: #{tpu_custom_call.1} parent=47 // loop_exit
                _
            $region48: #{tpu_custom_call.1} parent=43 // pred_fallthru
              _
            // Predicated region
            $region56: #{tpu_custom_call.1} parent=43 // pred_check
              _
            $region57: #{tpu_custom_call.1} parent=43 // pred_check_branch
              %315 = sbr.rel target = $region59
            $region58: #{tpu_custom_call.1} parent=43 // pred_region
              _
            $region59: #{tpu_custom_call.1} parent=43 // pred_fallthru
              _
          $region44: #{tpu_custom_call.1} parent=39 // pred_fallthru
            _
          %316 = vnop
        $region40: #{tpu_custom_call.1} parent=31 // pred_fallthru
          _
      $region32: #{tpu_custom_call.1} parent=5 // pred_fallthru
        _
      %p317 = scmp.le.s32.totalorder 1, %s24
      %p318 = scmp.lt.s32.totalorder %s24, 3
      %p319 = pnand %p317, %p318
      %p320 = pneg %p319
      // Predicated region
      $region60: #{tpu_custom_call.1} parent=5 // pred_check
        _
      $region61: #{tpu_custom_call.1} parent=5 // pred_check_branch
        %322 = sbr.rel (%p319) target = $region63
      $region62: #{tpu_custom_call.1} parent=5 // pred_region
        %s323 = ssub.s32 %s24, 1
        %s324 = sand.u32 %s37, 1
        %s325 = scalar_lea.sflag [#allocation3], %s324
        %s326 = sand.u32 %s37, 1
        %s327 = smul.addr %s326, 384
        %s328 = scalar_lea.vmem [#allocation2], %s327
        // Predicated region
        $region64: #{tpu_custom_call.1} parent=62 // pred_check
          %p329 = pneg %p50
        $region65: #{tpu_custom_call.1} parent=62 // pred_check_branch
          %331 = sbr.rel (%p329) target = $region67
        $region66: #{tpu_custom_call.1} parent=62 // pred_region
          %333 = dma.done %s325, 6144
        $region67: #{tpu_custom_call.1} parent=62 // pred_fallthru
          _
        // Predicated region
        $region68: #{tpu_custom_call.1} parent=62 // pred_check
          %p334 = pneg %p71
        $region69: #{tpu_custom_call.1} parent=62 // pred_check_branch
          %336 = sbr.rel (%p334) target = $region71
        $region70: #{tpu_custom_call.1} parent=62 // pred_region
          %338 = dma.done [#allocation6], 3072
        $region71: #{tpu_custom_call.1} parent=62 // pred_fallthru
          _
        %s339 = sand.u32 %s84, 1
        %s340 = sand.u32 %s84, 1
        %s341 = smul.addr %s340, 64
        %s342 = scalar_lea.vmem [#allocation7], %s341
        // Predicated region
        $region72: #{tpu_custom_call.1} parent=62 // pred_check
          %p343 = pneg %p97
        $region73: #{tpu_custom_call.1} parent=62 // pred_check_branch
          %345 = sbr.rel (%p343) target = $region75
        $region74: #{tpu_custom_call.1} parent=62 // pred_region
          _
        $region75: #{tpu_custom_call.1} parent=62 // pred_fallthru
          _
        %s346 = sand.u32 %s37, 1
        %s347 = scalar_lea.sflag [#allocation3], %s346
        %s348 = sand.u32 %s37, 1
        %s349 = smul.addr %s348, 384
        %s350 = scalar_lea.vmem [#allocation2], %s349
        %p351 = pneg %p50
        %p352 = pneg %p47
        %p353 = pneg %p71
        %p354 = pneg %p68
        %s355 = sand.u32 %s84, 1
        %s356 = sand.u32 %s84, 1
        %s357 = smul.addr %s356, 64
        %s358 = scalar_lea.vmem [#allocation7], %s357
        %p359 = pneg %p97
        %p360 = pneg %p94
        %p361 = pneg %p118
        %p362 = pneg %p115
        %p363 = pneg %p139
        %p364 = pneg %p136
        %p365 = pneg %p160
        %p366 = pneg %p157
        %p367 = pneg %p186
        %p368 = pneg %p183
        %s369 = sand.u32 %s173, 1
        %s370 = scalar_lea.sflag [#allocation4], %s369
        %s371 = sand.u32 %s173, 1
        %s372 = smul.addr %s371, 64
        %s373 = scalar_lea.vmem [#allocation8], %s372
        %p374 = pneg %p212
        %p375 = pneg %p209
        %s376 = sand.u32 %s199, 1
        %s377 = scalar_lea.sflag [#allocation10], %s376
        %s378 = sand.u32 %s199, 1
        %s379 = smul.addr %s378, 64
        %s380 = scalar_lea.vmem [#allocation9], %s379
        %s381 = smul.u32 2, %s29
        %s382 = smul.u32 2, %s29
        %s383 = smul.u32 2, %s29
        %s384 = smul.u32 2, %s29
        %v385 = vld [vmem:[#allocation5] sm:$0xff]
        %v386 = vld [vmem:[#allocation5 + $0x8] sm:$0xf]
        %v387 = vld [vmem:[#allocation5 + $0xc] sm:$0xff]
        %v388 = vld [vmem:[#allocation5 + $0x14] sm:$0xf]
        %v389 = vld [vmem:[#allocation5 + $0x18] sm:$0xff]
        %v390 = vld [vmem:[#allocation5 + $0x20] sm:$0xf]
        %v391 = vld [vmem:[#allocation5 + $0x24] sm:$0xff]
        %v392 = vld [vmem:[#allocation5 + $0x2c] sm:$0xf]
        %v393 = vld [vmem:[#allocation5 + $0x30] sm:$0xff]
        %v394 = vld [vmem:[#allocation5 + $0x38] sm:$0xf]
        %v395 = vld [vmem:[#allocation5 + $0x3c] sm:$0xff]
        %v396 = vld [vmem:[#allocation5 + $0x44] sm:$0xf]
        %v397 = vld [vmem:[#allocation5 + $0x48] sm:$0xff]
        %v398 = vld [vmem:[#allocation5 + $0x50] sm:$0xf]
        %v399 = vld [vmem:[#allocation5 + $0x54] sm:$0xff]
        %v400 = vld [vmem:[#allocation5 + $0x5c] sm:$0xf]
        %v401 = vld [vmem:[#allocation5 + $0x60] sm:$0xff]
        %v402 = vld [vmem:[#allocation5 + $0x68] sm:$0xf]
        %v403 = vld [vmem:[#allocation5 + $0x6c] sm:$0xff]
        %v404 = vld [vmem:[#allocation5 + $0x74] sm:$0xf]
        %v405 = vld [vmem:[#allocation5 + $0x78] sm:$0xff]
        %v406 = vld [vmem:[#allocation5 + $0x80] sm:$0xf]
        %v407 = vld [vmem:[#allocation5 + $0x84] sm:$0xff]
        %v408 = vld [vmem:[#allocation5 + $0x8c] sm:$0xf]
        %v409 = vld [vmem:[#allocation5 + $0x90] sm:$0xff]
        %v410 = vld [vmem:[#allocation5 + $0x98] sm:$0xf]
        %v411 = vld [vmem:[#allocation5 + $0x9c] sm:$0xff]
        %v412 = vld [vmem:[#allocation5 + $0xa4] sm:$0xf]
        %v413 = vld [vmem:[#allocation5 + $0xa8] sm:$0xff]
        %v414 = vld [vmem:[#allocation5 + $0xb0] sm:$0xf]
        %v415 = vld [vmem:[#allocation5 + $0xb4] sm:$0xff]
        %v416 = vld [vmem:[#allocation5 + $0xbc] sm:$0xf]
        %v417 = vld [vmem:[%s328] sm:$0xff]
        %v418 = vld [vmem:[%s328 + $0x8] sm:$0xff]
        %v419 = vld [vmem:[%s328 + $0x10] sm:$0xff]
        %v420 = vld [vmem:[%s328 + $0x18] sm:$0xff]
        %v421 = vld [vmem:[%s328 + $0x20] sm:$0xff]
        %v422 = vld [vmem:[%s328 + $0x28] sm:$0xff]
        %v423 = vld [vmem:[%s328 + $0x30] sm:$0xff]
        %v424 = vld [vmem:[%s328 + $0x38] sm:$0xff]
        %v425 = vld [vmem:[%s328 + $0x40] sm:$0xff]
        %v426 = vld [vmem:[%s328 + $0x48] sm:$0xff]
        %v427 = vld [vmem:[%s328 + $0x50] sm:$0xff]
        %v428 = vld [vmem:[%s328 + $0x58] sm:$0xff]
        %v429 = vld [vmem:[%s328 + $0x60] sm:$0xff]
        %v430 = vld [vmem:[%s328 + $0x68] sm:$0xff]
        %v431 = vld [vmem:[%s328 + $0x70] sm:$0xff]
        %v432 = vld [vmem:[%s328 + $0x78] sm:$0xff]
        %v433 = vld [vmem:[%s328 + $0x80] sm:$0xff]
        %v434 = vld [vmem:[%s328 + $0x88] sm:$0xff]
        %v435 = vld [vmem:[%s328 + $0x90] sm:$0xff]
        %v436 = vld [vmem:[%s328 + $0x98] sm:$0xff]
        %v437 = vld [vmem:[%s328 + $0xa0] sm:$0xff]
        %v438 = vld [vmem:[%s328 + $0xa8] sm:$0xff]
        %v439 = vld [vmem:[%s328 + $0xb0] sm:$0xff]
        %v440 = vld [vmem:[%s328 + $0xb8] sm:$0xff]
        %v441 = vld [vmem:[%s328 + $0xc0] sm:$0xff]
        %v442 = vld [vmem:[%s328 + $0xc8] sm:$0xff]
        %v443 = vld [vmem:[%s328 + $0xd0] sm:$0xff]
        %v444 = vld [vmem:[%s328 + $0xd8] sm:$0xff]
        %v445 = vld [vmem:[%s328 + $0xe0] sm:$0xff]
        %v446 = vld [vmem:[%s328 + $0xe8] sm:$0xff]
        %v447 = vld [vmem:[%s328 + $0xf0] sm:$0xff]
        %v448 = vld [vmem:[%s328 + $0xf8] sm:$0xff]
        %v449 = vld [vmem:[%s328 + $0x100] sm:$0xff]
        %v450 = vld [vmem:[%s328 + $0x108] sm:$0xff]
        %v451 = vld [vmem:[%s328 + $0x110] sm:$0xff]
        %v452 = vld [vmem:[%s328 + $0x118] sm:$0xff]
        %v453 = vld [vmem:[%s328 + $0x120] sm:$0xff]
        %v454 = vld [vmem:[%s328 + $0x128] sm:$0xff]
        %v455 = vld [vmem:[%s328 + $0x130] sm:$0xff]
        %v456 = vld [vmem:[%s328 + $0x138] sm:$0xff]
        %v457 = vld [vmem:[%s328 + $0x140] sm:$0xff]
        %v458 = vld [vmem:[%s328 + $0x148] sm:$0xff]
        %v459 = vld [vmem:[%s328 + $0x150] sm:$0xff]
        %v460 = vld [vmem:[%s328 + $0x158] sm:$0xff]
        %v461 = vld [vmem:[%s328 + $0x160] sm:$0xff]
        %v462 = vld [vmem:[%s328 + $0x168] sm:$0xff]
        %v463 = vld [vmem:[%s328 + $0x170] sm:$0xff]
        %v464 = vld [vmem:[%s328 + $0x178] sm:$0xff]
        %v465 = vld [vmem:[%s3] sm:$0xff]
        %v466 = vld [vmem:[%s3 + $0x8] sm:$0xff]
        %v467 = vld [vmem:[%s3 + $0x10] sm:$0xff]
        %v468 = vld [vmem:[%s3 + $0x18] sm:$0xff]
        %v469 = vld [vmem:[%s3 + $0x20] sm:$0xff]
        %v470 = vld [vmem:[%s3 + $0x28] sm:$0xff]
        %v471 = vld [vmem:[%s3 + $0x30] sm:$0xff]
        %v472 = vld [vmem:[%s3 + $0x38] sm:$0xff]
        %v473 = vld [vmem:[%s3 + $0x40] sm:$0xff]
        %v474 = vld [vmem:[%s3 + $0x48] sm:$0xff]
        %v475 = vld [vmem:[%s3 + $0x50] sm:$0xff]
        %v476 = vld [vmem:[%s3 + $0x58] sm:$0xff]
        %v477 = vld [vmem:[%s3 + $0x60] sm:$0xff]
        %v478 = vld [vmem:[%s3 + $0x68] sm:$0xff]
        %v479 = vld [vmem:[%s3 + $0x70] sm:$0xff]
        %v480 = vld [vmem:[%s3 + $0x78] sm:$0xff]
        %482 = vset.pattern.permute.xlu0 0
        %483 = vperm.xlu0 %482, %v465
        %v484 = vpop.permute.xlu0 %483
        %487 = vset.pattern.permute.xlu0 0
        %488 = vperm.xlu0 %487, %v466
        %v489 = vpop.permute.xlu0 %488
        %492 = vset.pattern.permute.xlu0 0
        %493 = vperm.xlu0 %492, %v467
        %v494 = vpop.permute.xlu0 %493
        %497 = vset.pattern.permute.xlu0 0
        %498 = vperm.xlu0 %497, %v468
        %v499 = vpop.permute.xlu0 %498
        %502 = vset.pattern.permute.xlu0 0
        %503 = vperm.xlu0 %502, %v469
        %v504 = vpop.permute.xlu0 %503
        %507 = vset.pattern.permute.xlu0 0
        %508 = vperm.xlu0 %507, %v470
        %v509 = vpop.permute.xlu0 %508
        %512 = vset.pattern.permute.xlu0 0
        %513 = vperm.xlu0 %512, %v471
        %v514 = vpop.permute.xlu0 %513
        %517 = vset.pattern.permute.xlu0 0
        %518 = vperm.xlu0 %517, %v472
        %v519 = vpop.permute.xlu0 %518
        %522 = vset.pattern.permute.xlu0 0
        %523 = vperm.xlu0 %522, %v473
        %v524 = vpop.permute.xlu0 %523
        %527 = vset.pattern.permute.xlu0 0
        %528 = vperm.xlu0 %527, %v474
        %v529 = vpop.permute.xlu0 %528
        %532 = vset.pattern.permute.xlu0 0
        %533 = vperm.xlu0 %532, %v475
        %v534 = vpop.permute.xlu0 %533
        %537 = vset.pattern.permute.xlu0 0
        %538 = vperm.xlu0 %537, %v476
        %v539 = vpop.permute.xlu0 %538
        %542 = vset.pattern.permute.xlu0 0
        %543 = vperm.xlu0 %542, %v477
        %v544 = vpop.permute.xlu0 %543
        %547 = vset.pattern.permute.xlu0 0
        %548 = vperm.xlu0 %547, %v478
        %v549 = vpop.permute.xlu0 %548
        %552 = vset.pattern.permute.xlu0 0
        %553 = vperm.xlu0 %552, %v479
        %v554 = vpop.permute.xlu0 %553
        %557 = vset.pattern.permute.xlu0 0
        %558 = vperm.xlu0 %557, %v480
        %v559 = vpop.permute.xlu0 %558
        %v593 = vunpack.c.l.b16 %v385
        %v594 = vunpack.c.h.b16 %v385
        %v595 = vunpack.c.l.b16 %v386
        %v596 = vunpack.c.l.b16 %v387
        %v597 = vunpack.c.h.b16 %v387
        %v598 = vunpack.c.l.b16 %v388
        %v599 = vunpack.c.l.b16 %v389
        %v600 = vunpack.c.h.b16 %v389
        %v601 = vunpack.c.l.b16 %v390
        %v602 = vunpack.c.l.b16 %v391
        %v603 = vunpack.c.h.b16 %v391
        %v604 = vunpack.c.l.b16 %v392
        %v605 = vunpack.c.l.b16 %v393
        %v606 = vunpack.c.h.b16 %v393
        %v607 = vunpack.c.l.b16 %v394
        %v608 = vunpack.c.l.b16 %v395
        %v609 = vunpack.c.h.b16 %v395
        %v610 = vunpack.c.l.b16 %v396
        %v611 = vunpack.c.l.b16 %v397
        %v612 = vunpack.c.h.b16 %v397
        %v613 = vunpack.c.l.b16 %v398
        %v614 = vunpack.c.l.b16 %v399
        %v615 = vunpack.c.h.b16 %v399
        %v616 = vunpack.c.l.b16 %v400
        %v617 = vunpack.c.l.b16 %v401
        %v618 = vunpack.c.h.b16 %v401
        %v619 = vunpack.c.l.b16 %v402
        %v620 = vunpack.c.l.b16 %v403
        %v621 = vunpack.c.h.b16 %v403
        %v622 = vunpack.c.l.b16 %v404
        %v623 = vunpack.c.l.b16 %v405
        %v624 = vunpack.c.h.b16 %v405
        %v625 = vunpack.c.l.b16 %v406
        %v626 = vunpack.c.l.b16 %v407
        %v627 = vunpack.c.h.b16 %v407
        %v628 = vunpack.c.l.b16 %v408
        %v629 = vunpack.c.l.b16 %v409
        %v630 = vunpack.c.h.b16 %v409
        %v631 = vunpack.c.l.b16 %v410
        %v632 = vunpack.c.l.b16 %v411
        %v633 = vunpack.c.h.b16 %v411
        %v634 = vunpack.c.l.b16 %v412
        %v635 = vunpack.c.l.b16 %v413
        %v636 = vunpack.c.h.b16 %v413
        %v637 = vunpack.c.l.b16 %v414
        %v638 = vunpack.c.l.b16 %v415
        %v639 = vunpack.c.h.b16 %v415
        %v640 = vunpack.c.l.b16 %v416
        %v641 = vpack.c.b16 %v596, %v593
        %v642 = vpack.c.b16 %v597, %v594
        %v643 = vpack.c.b16 %v598, %v595
        %v644 = vpack.c.b16 %v602, %v599
        %v645 = vpack.c.b16 %v603, %v600
        %v646 = vpack.c.b16 %v604, %v601
        %v647 = vpack.c.b16 %v608, %v605
        %v648 = vpack.c.b16 %v609, %v606
        %v649 = vpack.c.b16 %v610, %v607
        %v650 = vpack.c.b16 %v614, %v611
        %v651 = vpack.c.b16 %v615, %v612
        %v652 = vpack.c.b16 %v616, %v613
        %v653 = vpack.c.b16 %v620, %v617
        %v654 = vpack.c.b16 %v621, %v618
        %v655 = vpack.c.b16 %v622, %v619
        %v656 = vpack.c.b16 %v626, %v623
        %v657 = vpack.c.b16 %v627, %v624
        %v658 = vpack.c.b16 %v628, %v625
        %v659 = vpack.c.b16 %v632, %v629
        %v660 = vpack.c.b16 %v633, %v630
        %v661 = vpack.c.b16 %v634, %v631
        %v662 = vpack.c.b16 %v638, %v635
        %v663 = vpack.c.b16 %v639, %v636
        %v664 = vpack.c.b16 %v640, %v637
        %v737 = vunpack.c.l.b16 %v417
        %v738 = vunpack.c.h.b16 %v417
        %v739 = vunpack.c.l.b16 %v418
        %v740 = vunpack.c.h.b16 %v418
        %v741 = vunpack.c.l.b16 %v419
        %v742 = vunpack.c.h.b16 %v419
        %v743 = vunpack.c.l.b16 %v420
        %v744 = vunpack.c.h.b16 %v420
        %v745 = vunpack.c.l.b16 %v421
        %v746 = vunpack.c.h.b16 %v421
        %v747 = vunpack.c.l.b16 %v422
        %v748 = vunpack.c.h.b16 %v422
        %v749 = vunpack.c.l.b16 %v423
        %v750 = vunpack.c.h.b16 %v423
        %v751 = vunpack.c.l.b16 %v424
        %v752 = vunpack.c.h.b16 %v424
        %v753 = vunpack.c.l.b16 %v425
        %v754 = vunpack.c.h.b16 %v425
        %v755 = vunpack.c.l.b16 %v426
        %v756 = vunpack.c.h.b16 %v426
        %v757 = vunpack.c.l.b16 %v427
        %v758 = vunpack.c.h.b16 %v427
        %v759 = vunpack.c.l.b16 %v428
        %v760 = vunpack.c.h.b16 %v428
        %v761 = vunpack.c.l.b16 %v429
        %v762 = vunpack.c.h.b16 %v429
        %v763 = vunpack.c.l.b16 %v430
        %v764 = vunpack.c.h.b16 %v430
        %v765 = vunpack.c.l.b16 %v431
        %v766 = vunpack.c.h.b16 %v431
        %v767 = vunpack.c.l.b16 %v432
        %v768 = vunpack.c.h.b16 %v432
        %v769 = vunpack.c.l.b16 %v433
        %v770 = vunpack.c.h.b16 %v433
        %v771 = vunpack.c.l.b16 %v434
        %v772 = vunpack.c.h.b16 %v434
        %v773 = vunpack.c.l.b16 %v435
        %v774 = vunpack.c.h.b16 %v435
        %v775 = vunpack.c.l.b16 %v436
        %v776 = vunpack.c.h.b16 %v436
        %v777 = vunpack.c.l.b16 %v437
        %v778 = vunpack.c.h.b16 %v437
        %v779 = vunpack.c.l.b16 %v438
        %v780 = vunpack.c.h.b16 %v438
        %v781 = vunpack.c.l.b16 %v439
        %v782 = vunpack.c.h.b16 %v439
        %v783 = vunpack.c.l.b16 %v440
        %v784 = vunpack.c.h.b16 %v440
        %v785 = vunpack.c.l.b16 %v441
        %v786 = vunpack.c.h.b16 %v441
        %v787 = vunpack.c.l.b16 %v442
        %v788 = vunpack.c.h.b16 %v442
        %v789 = vunpack.c.l.b16 %v443
        %v790 = vunpack.c.h.b16 %v443
        %v791 = vunpack.c.l.b16 %v444
        %v792 = vunpack.c.h.b16 %v444
        %v793 = vunpack.c.l.b16 %v445
        %v794 = vunpack.c.h.b16 %v445
        %v795 = vunpack.c.l.b16 %v446
        %v796 = vunpack.c.h.b16 %v446
        %v797 = vunpack.c.l.b16 %v447
        %v798 = vunpack.c.h.b16 %v447
        %v799 = vunpack.c.l.b16 %v448
        %v800 = vunpack.c.h.b16 %v448
        %v801 = vunpack.c.l.b16 %v449
        %v802 = vunpack.c.h.b16 %v449
        %v803 = vunpack.c.l.b16 %v450
        %v804 = vunpack.c.h.b16 %v450
        %v805 = vunpack.c.l.b16 %v451
        %v806 = vunpack.c.h.b16 %v451
        %v807 = vunpack.c.l.b16 %v452
        %v808 = vunpack.c.h.b16 %v452
        %v809 = vunpack.c.l.b16 %v453
        %v810 = vunpack.c.h.b16 %v453
        %v811 = vunpack.c.l.b16 %v454
        %v812 = vunpack.c.h.b16 %v454
        %v813 = vunpack.c.l.b16 %v455
        %v814 = vunpack.c.h.b16 %v455
        %v815 = vunpack.c.l.b16 %v456
        %v816 = vunpack.c.h.b16 %v456
        %v817 = vunpack.c.l.b16 %v457
        %v818 = vunpack.c.h.b16 %v457
        %v819 = vunpack.c.l.b16 %v458
        %v820 = vunpack.c.h.b16 %v458
        %v821 = vunpack.c.l.b16 %v459
        %v822 = vunpack.c.h.b16 %v459
        %v823 = vunpack.c.l.b16 %v460
        %v824 = vunpack.c.h.b16 %v460
        %v825 = vunpack.c.l.b16 %v461
        %v826 = vunpack.c.h.b16 %v461
        %v827 = vunpack.c.l.b16 %v462
        %v828 = vunpack.c.h.b16 %v462
        %v829 = vunpack.c.l.b16 %v463
        %v830 = vunpack.c.h.b16 %v463
        %v831 = vunpack.c.l.b16 %v464
        %v832 = vunpack.c.h.b16 %v464
        %v833 = vpack.c.b16 %v739, %v737
        %v834 = vpack.c.b16 %v740, %v738
        %v835 = vpack.c.b16 %v743, %v741
        %v836 = vpack.c.b16 %v744, %v742
        %v837 = vpack.c.b16 %v747, %v745
        %v838 = vpack.c.b16 %v748, %v746
        %v839 = vpack.c.b16 %v751, %v749
        %v840 = vpack.c.b16 %v752, %v750
        %v841 = vpack.c.b16 %v755, %v753
        %v842 = vpack.c.b16 %v756, %v754
        %v843 = vpack.c.b16 %v759, %v757
        %v844 = vpack.c.b16 %v760, %v758
        %v845 = vpack.c.b16 %v763, %v761
        %v846 = vpack.c.b16 %v764, %v762
        %v847 = vpack.c.b16 %v767, %v765
        %v848 = vpack.c.b16 %v768, %v766
        %v849 = vpack.c.b16 %v771, %v769
        %v850 = vpack.c.b16 %v772, %v770
        %v851 = vpack.c.b16 %v775, %v773
        %v852 = vpack.c.b16 %v776, %v774
        %v853 = vpack.c.b16 %v779, %v777
        %v854 = vpack.c.b16 %v780, %v778
        %v855 = vpack.c.b16 %v783, %v781
        %v856 = vpack.c.b16 %v784, %v782
        %v857 = vpack.c.b16 %v787, %v785
        %v858 = vpack.c.b16 %v788, %v786
        %v859 = vpack.c.b16 %v791, %v789
        %v860 = vpack.c.b16 %v792, %v790
        %v861 = vpack.c.b16 %v795, %v793
        %v862 = vpack.c.b16 %v796, %v794
        %v863 = vpack.c.b16 %v799, %v797
        %v864 = vpack.c.b16 %v800, %v798
        %v865 = vpack.c.b16 %v803, %v801
        %v866 = vpack.c.b16 %v804, %v802
        %v867 = vpack.c.b16 %v807, %v805
        %v868 = vpack.c.b16 %v808, %v806
        %v869 = vpack.c.b16 %v811, %v809
        %v870 = vpack.c.b16 %v812, %v810
        %v871 = vpack.c.b16 %v815, %v813
        %v872 = vpack.c.b16 %v816, %v814
        %v873 = vpack.c.b16 %v819, %v817
        %v874 = vpack.c.b16 %v820, %v818
        %v875 = vpack.c.b16 %v823, %v821
        %v876 = vpack.c.b16 %v824, %v822
        %v877 = vpack.c.b16 %v827, %v825
        %v878 = vpack.c.b16 %v828, %v826
        %v879 = vpack.c.b16 %v831, %v829
        %v880 = vpack.c.b16 %v832, %v830
        %929 = vmatpush.bf16.msra.mxu0 %v847
        %930 = vmatpush.bf16.msra.mxu0 %v845
        %931 = vmatpush.bf16.msra.mxu0 %v843
        %932 = vmatpush.bf16.msra.mxu0 %v841
        %933 = vmatpush.bf16.msra.mxu0 %v839
        %934 = vmatpush.bf16.msra.mxu0 %v837
        %935 = vmatpush.bf16.msra.mxu0 %v835
        %936 = vmatpush.bf16.msra.mxu0 %v833
        %937 = vmatmul.bf16.gmra.mxu0 %v641
        %v938 = vpop.f32.mrf.mxu0
        %v939 = vadd.f32 %v484, %v938
        %v940 = vpop.f32.mrf.mxu0
        %v941 = vadd.f32 %v489, %v940
        %942 = vmatmul.bf16.gmra.mxu0 %v644
        %v943 = vpop.f32.mrf.mxu0
        %v944 = vadd.f32 %v494, %v943
        %v945 = vpop.f32.mrf.mxu0
        %v946 = vadd.f32 %v499, %v945
        %947 = vmatmul.bf16.gmra.mxu0 %v647
        %v948 = vpop.f32.mrf.mxu0
        %v949 = vadd.f32 %v504, %v948
        %v950 = vpop.f32.mrf.mxu0
        %v951 = vadd.f32 %v509, %v950
        %952 = vmatmul.bf16.gmra.mxu0 %v650
        %v953 = vpop.f32.mrf.mxu0
        %v954 = vadd.f32 %v514, %v953
        %v955 = vpop.f32.mrf.mxu0
        %v956 = vadd.f32 %v519, %v955
        %957 = vmatmul.bf16.gmra.mxu0 %v653
        %v958 = vpop.f32.mrf.mxu0
        %v959 = vadd.f32 %v524, %v958
        %v960 = vpop.f32.mrf.mxu0
        %v961 = vadd.f32 %v529, %v960
        %962 = vmatmul.bf16.gmra.mxu0 %v656
        %v963 = vpop.f32.mrf.mxu0
        %v964 = vadd.f32 %v534, %v963
        %v965 = vpop.f32.mrf.mxu0
        %v966 = vadd.f32 %v539, %v965
        %967 = vmatmul.bf16.gmra.mxu0 %v659
        %v968 = vpop.f32.mrf.mxu0
        %v969 = vadd.f32 %v544, %v968
        %v970 = vpop.f32.mrf.mxu0
        %v971 = vadd.f32 %v549, %v970
        %972 = vmatmul.bf16.gmra.mxu0 %v662
        %v973 = vpop.f32.mrf.mxu0
        %v974 = vadd.f32 %v554, %v973
        %v975 = vpop.f32.mrf.mxu0
        %v976 = vadd.f32 %v559, %v975
        %977 = vdwg.mxu0
        %978 = vmatpush.bf16.msra.mxu0 %v863
        %979 = vmatpush.bf16.msra.mxu0 %v861
        %980 = vmatpush.bf16.msra.mxu0 %v859
        %981 = vmatpush.bf16.msra.mxu0 %v857
        %982 = vmatpush.bf16.msra.mxu0 %v855
        %983 = vmatpush.bf16.msra.mxu0 %v853
        %984 = vmatpush.bf16.msra.mxu0 %v851
        %985 = vmatpush.bf16.msra.mxu0 %v849
        %986 = vmatmul.bf16.gmra.mxu0 %v642
        %v987 = vpop.f32.mrf.mxu0
        %v988 = vadd.f32 %v939, %v987
        %v989 = vpop.f32.mrf.mxu0
        %v990 = vadd.f32 %v941, %v989
        %991 = vmatmul.bf16.gmra.mxu0 %v645
        %v992 = vpop.f32.mrf.mxu0
        %v993 = vadd.f32 %v944, %v992
        %v994 = vpop.f32.mrf.mxu0
        %v995 = vadd.f32 %v946, %v994
        %996 = vmatmul.bf16.gmra.mxu0 %v648
        %v997 = vpop.f32.mrf.mxu0
        %v998 = vadd.f32 %v949, %v997
        %v999 = vpop.f32.mrf.mxu0
        %v1000 = vadd.f32 %v951, %v999
        %1001 = vmatmul.bf16.gmra.mxu0 %v651
        %v1002 = vpop.f32.mrf.mxu0
        %v1003 = vadd.f32 %v954, %v1002
        %v1004 = vpop.f32.mrf.mxu0
        %v1005 = vadd.f32 %v956, %v1004
        %1006 = vmatmul.bf16.gmra.mxu0 %v654
        %v1007 = vpop.f32.mrf.mxu0
        %v1008 = vadd.f32 %v959, %v1007
        %v1009 = vpop.f32.mrf.mxu0
        %v1010 = vadd.f32 %v961, %v1009
        %1011 = vmatmul.bf16.gmra.mxu0 %v657
        %v1012 = vpop.f32.mrf.mxu0
        %v1013 = vadd.f32 %v964, %v1012
        %v1014 = vpop.f32.mrf.mxu0
        %v1015 = vadd.f32 %v966, %v1014
        %1016 = vmatmul.bf16.gmra.mxu0 %v660
        %v1017 = vpop.f32.mrf.mxu0
        %v1018 = vadd.f32 %v969, %v1017
        %v1019 = vpop.f32.mrf.mxu0
        %v1020 = vadd.f32 %v971, %v1019
        %1021 = vmatmul.bf16.gmra.mxu0 %v663
        %v1022 = vpop.f32.mrf.mxu0
        %v1023 = vadd.f32 %v974, %v1022
        %v1024 = vpop.f32.mrf.mxu0
        %v1025 = vadd.f32 %v976, %v1024
        %1026 = vdwg.mxu0
        %1027 = vmatpush.bf16.msra.mxu0 %v879
        %1028 = vmatpush.bf16.msra.mxu0 %v877
        %1029 = vmatpush.bf16.msra.mxu0 %v875
        %1030 = vmatpush.bf16.msra.mxu0 %v873
        %1031 = vmatpush.bf16.msra.mxu0 %v871
        %1032 = vmatpush.bf16.msra.mxu0 %v869
        %1033 = vmatpush.bf16.msra.mxu0 %v867
        %1034 = vmatpush.bf16.msra.mxu0 %v865
        %1035 = vmatmul.bf16.gmra.mxu0 %v643
        %v1036 = vpop.f32.mrf.mxu0
        %v1037 = vadd.f32 %v988, %v1036
        %v1038 = vpop.f32.mrf.mxu0
        %v1039 = vadd.f32 %v990, %v1038
        %1040 = vmatmul.bf16.gmra.mxu0 %v646
        %v1041 = vpop.f32.mrf.mxu0
        %v1042 = vadd.f32 %v993, %v1041
        %v1043 = vpop.f32.mrf.mxu0
        %v1044 = vadd.f32 %v995, %v1043
        %1045 = vmatmul.bf16.gmra.mxu0 %v649
        %v1046 = vpop.f32.mrf.mxu0
        %v1047 = vadd.f32 %v998, %v1046
        %v1048 = vpop.f32.mrf.mxu0
        %v1049 = vadd.f32 %v1000, %v1048
        %1050 = vmatmul.bf16.gmra.mxu0 %v652
        %v1051 = vpop.f32.mrf.mxu0
        %v1052 = vadd.f32 %v1003, %v1051
        %v1053 = vpop.f32.mrf.mxu0
        %v1054 = vadd.f32 %v1005, %v1053
        %1055 = vmatmul.bf16.gmra.mxu0 %v655
        %v1056 = vpop.f32.mrf.mxu0
        %v1057 = vadd.f32 %v1008, %v1056
        %v1058 = vpop.f32.mrf.mxu0
        %v1059 = vadd.f32 %v1010, %v1058
        %1060 = vmatmul.bf16.gmra.mxu0 %v658
        %v1061 = vpop.f32.mrf.mxu0
        %v1062 = vadd.f32 %v1013, %v1061
        %v1063 = vpop.f32.mrf.mxu0
        %v1064 = vadd.f32 %v1015, %v1063
        %1065 = vmatmul.bf16.gmra.mxu0 %v661
        %v1066 = vpop.f32.mrf.mxu0
        %v1067 = vadd.f32 %v1018, %v1066
        %v1068 = vpop.f32.mrf.mxu0
        %v1069 = vadd.f32 %v1020, %v1068
        %1070 = vmatmul.bf16.gmra.mxu0 %v664
        %v1071 = vpop.f32.mrf.mxu0
        %v1072 = vadd.f32 %v1023, %v1071
        %v1073 = vpop.f32.mrf.mxu0
        %v1074 = vadd.f32 %v1025, %v1073
        %1075 = vdwg.mxu0
        %1076 = vmatpush.bf16.msra.mxu0 %v848
        %1077 = vmatpush.bf16.msra.mxu0 %v846
        %1078 = vmatpush.bf16.msra.mxu0 %v844
        %1079 = vmatpush.bf16.msra.mxu0 %v842
        %1080 = vmatpush.bf16.msra.mxu0 %v840
        %1081 = vmatpush.bf16.msra.mxu0 %v838
        %1082 = vmatpush.bf16.msra.mxu0 %v836
        %1083 = vmatpush.bf16.msra.mxu0 %v834
        %1084 = vmatmul.bf16.gmra.mxu0 %v641
        %v1085 = vpop.f32.mrf.mxu0
        %v1086 = vadd.f32 %v484, %v1085
        %v1087 = vpop.f32.mrf.mxu0
        %v1088 = vadd.f32 %v489, %v1087
        %1089 = vmatmul.bf16.gmra.mxu0 %v644
        %v1090 = vpop.f32.mrf.mxu0
        %v1091 = vadd.f32 %v494, %v1090
        %v1092 = vpop.f32.mrf.mxu0
        %v1093 = vadd.f32 %v499, %v1092
        %1094 = vmatmul.bf16.gmra.mxu0 %v647
        %v1095 = vpop.f32.mrf.mxu0
        %v1096 = vadd.f32 %v504, %v1095
        %v1097 = vpop.f32.mrf.mxu0
        %v1098 = vadd.f32 %v509, %v1097
        %1099 = vmatmul.bf16.gmra.mxu0 %v650
        %v1100 = vpop.f32.mrf.mxu0
        %v1101 = vadd.f32 %v514, %v1100
        %v1102 = vpop.f32.mrf.mxu0
        %v1103 = vadd.f32 %v519, %v1102
        %1104 = vmatmul.bf16.gmra.mxu0 %v653
        %v1105 = vpop.f32.mrf.mxu0
        %v1106 = vadd.f32 %v524, %v1105
        %v1107 = vpop.f32.mrf.mxu0
        %v1108 = vadd.f32 %v529, %v1107
        %1109 = vmatmul.bf16.gmra.mxu0 %v656
        %v1110 = vpop.f32.mrf.mxu0
        %v1111 = vadd.f32 %v534, %v1110
        %v1112 = vpop.f32.mrf.mxu0
        %v1113 = vadd.f32 %v539, %v1112
        %1114 = vmatmul.bf16.gmra.mxu0 %v659
        %v1115 = vpop.f32.mrf.mxu0
        %v1116 = vadd.f32 %v544, %v1115
        %v1117 = vpop.f32.mrf.mxu0
        %v1118 = vadd.f32 %v549, %v1117
        %1119 = vmatmul.bf16.gmra.mxu0 %v662
        %v1120 = vpop.f32.mrf.mxu0
        %v1121 = vadd.f32 %v554, %v1120
        %v1122 = vpop.f32.mrf.mxu0
        %v1123 = vadd.f32 %v559, %v1122
        %1124 = vdwg.mxu0
        %1125 = vmatpush.bf16.msra.mxu0 %v864
        %1126 = vmatpush.bf16.msra.mxu0 %v862
        %1127 = vmatpush.bf16.msra.mxu0 %v860
        %1128 = vmatpush.bf16.msra.mxu0 %v858
        %1129 = vmatpush.bf16.msra.mxu0 %v856
        %1130 = vmatpush.bf16.msra.mxu0 %v854
        %1131 = vmatpush.bf16.msra.mxu0 %v852
        %1132 = vmatpush.bf16.msra.mxu0 %v850
        %1133 = vmatmul.bf16.gmra.mxu0 %v642
        %v1134 = vpop.f32.mrf.mxu0
        %v1135 = vadd.f32 %v1086, %v1134
        %v1136 = vpop.f32.mrf.mxu0
        %v1137 = vadd.f32 %v1088, %v1136
        %1138 = vmatmul.bf16.gmra.mxu0 %v645
        %v1139 = vpop.f32.mrf.mxu0
        %v1140 = vadd.f32 %v1091, %v1139
        %v1141 = vpop.f32.mrf.mxu0
        %v1142 = vadd.f32 %v1093, %v1141
        %1143 = vmatmul.bf16.gmra.mxu0 %v648
        %v1144 = vpop.f32.mrf.mxu0
        %v1145 = vadd.f32 %v1096, %v1144
        %v1146 = vpop.f32.mrf.mxu0
        %v1147 = vadd.f32 %v1098, %v1146
        %1148 = vmatmul.bf16.gmra.mxu0 %v651
        %v1149 = vpop.f32.mrf.mxu0
        %v1150 = vadd.f32 %v1101, %v1149
        %v1151 = vpop.f32.mrf.mxu0
        %v1152 = vadd.f32 %v1103, %v1151
        %1153 = vmatmul.bf16.gmra.mxu0 %v654
        %v1154 = vpop.f32.mrf.mxu0
        %v1155 = vadd.f32 %v1106, %v1154
        %v1156 = vpop.f32.mrf.mxu0
        %v1157 = vadd.f32 %v1108, %v1156
        %1158 = vmatmul.bf16.gmra.mxu0 %v657
        %v1159 = vpop.f32.mrf.mxu0
        %v1160 = vadd.f32 %v1111, %v1159
        %v1161 = vpop.f32.mrf.mxu0
        %v1162 = vadd.f32 %v1113, %v1161
        %1163 = vmatmul.bf16.gmra.mxu0 %v660
        %v1164 = vpop.f32.mrf.mxu0
        %v1165 = vadd.f32 %v1116, %v1164
        %v1166 = vpop.f32.mrf.mxu0
        %v1167 = vadd.f32 %v1118, %v1166
        %1168 = vmatmul.bf16.gmra.mxu0 %v663
        %v1169 = vpop.f32.mrf.mxu0
        %v1170 = vadd.f32 %v1121, %v1169
        %v1171 = vpop.f32.mrf.mxu0
        %v1172 = vadd.f32 %v1123, %v1171
        %1173 = vdwg.mxu0
        %1174 = vmatpush.bf16.msra.mxu0 %v880
        %1175 = vmatpush.bf16.msra.mxu0 %v878
        %1176 = vmatpush.bf16.msra.mxu0 %v876
        %1177 = vmatpush.bf16.msra.mxu0 %v874
        %1178 = vmatpush.bf16.msra.mxu0 %v872
        %1179 = vmatpush.bf16.msra.mxu0 %v870
        %1180 = vmatpush.bf16.msra.mxu0 %v868
        %1181 = vmatpush.bf16.msra.mxu0 %v866
        %1182 = vmatmul.bf16.gmra.mxu0 %v643
        %v1183 = vpop.f32.mrf.mxu0
        %v1184 = vadd.f32 %v1135, %v1183
        %v1185 = vpop.f32.mrf.mxu0
        %v1186 = vadd.f32 %v1137, %v1185
        %1187 = vmatmul.bf16.gmra.mxu0 %v646
        %v1188 = vpop.f32.mrf.mxu0
        %v1189 = vadd.f32 %v1140, %v1188
        %v1190 = vpop.f32.mrf.mxu0
        %v1191 = vadd.f32 %v1142, %v1190
        %1192 = vmatmul.bf16.gmra.mxu0 %v649
        %v1193 = vpop.f32.mrf.mxu0
        %v1194 = vadd.f32 %v1145, %v1193
        %v1195 = vpop.f32.mrf.mxu0
        %v1196 = vadd.f32 %v1147, %v1195
        %1197 = vmatmul.bf16.gmra.mxu0 %v652
        %v1198 = vpop.f32.mrf.mxu0
        %v1199 = vadd.f32 %v1150, %v1198
        %v1200 = vpop.f32.mrf.mxu0
        %v1201 = vadd.f32 %v1152, %v1200
        %1202 = vmatmul.bf16.gmra.mxu0 %v655
        %v1203 = vpop.f32.mrf.mxu0
        %v1204 = vadd.f32 %v1155, %v1203
        %v1205 = vpop.f32.mrf.mxu0
        %v1206 = vadd.f32 %v1157, %v1205
        %1207 = vmatmul.bf16.gmra.mxu0 %v658
        %v1208 = vpop.f32.mrf.mxu0
        %v1209 = vadd.f32 %v1160, %v1208
        %v1210 = vpop.f32.mrf.mxu0
        %v1211 = vadd.f32 %v1162, %v1210
        %1212 = vmatmul.bf16.gmra.mxu0 %v661
        %v1213 = vpop.f32.mrf.mxu0
        %v1214 = vadd.f32 %v1165, %v1213
        %v1215 = vpop.f32.mrf.mxu0
        %v1216 = vadd.f32 %v1167, %v1215
        %1217 = vmatmul.bf16.gmra.mxu0 %v664
        %v1218 = vpop.f32.mrf.mxu0
        %v1219 = vadd.f32 %v1170, %v1218
        %v1220 = vpop.f32.mrf.mxu0
        %v1221 = vadd.f32 %v1172, %v1220
        %1222 = vdwg.mxu0
        %v1223 = vxor.u32 %v1037, 2147483648
        %v1224 = vxor.u32 %v1184, 2147483648
        %v1225 = vxor.u32 %v1039, 2147483648
        %v1226 = vxor.u32 %v1186, 2147483648
        %v1227 = vxor.u32 %v1042, 2147483648
        %v1228 = vxor.u32 %v1189, 2147483648
        %v1229 = vxor.u32 %v1044, 2147483648
        %v1230 = vxor.u32 %v1191, 2147483648
        %v1231 = vxor.u32 %v1047, 2147483648
        %v1232 = vxor.u32 %v1194, 2147483648
        %v1233 = vxor.u32 %v1049, 2147483648
        %v1234 = vxor.u32 %v1196, 2147483648
        %v1235 = vxor.u32 %v1052, 2147483648
        %v1236 = vxor.u32 %v1199, 2147483648
        %v1237 = vxor.u32 %v1054, 2147483648
        %v1238 = vxor.u32 %v1201, 2147483648
        %v1239 = vxor.u32 %v1057, 2147483648
        %v1240 = vxor.u32 %v1204, 2147483648
        %v1241 = vxor.u32 %v1059, 2147483648
        %v1242 = vxor.u32 %v1206, 2147483648
        %v1243 = vxor.u32 %v1062, 2147483648
        %v1244 = vxor.u32 %v1209, 2147483648
        %v1245 = vxor.u32 %v1064, 2147483648
        %v1246 = vxor.u32 %v1211, 2147483648
        %v1247 = vmul.f32 %v1223, 1.442695
        %v1248 = vpow.pop %v1247
        %v1249 = vmul.f32 %v1224, 1.442695
        %v1250 = vpow.pop %v1249
        %v1251 = vmul.f32 %v1225, 1.442695
        %v1252 = vpow.pop %v1251
        %v1253 = vmul.f32 %v1226, 1.442695
        %v1254 = vpow.pop %v1253
        %v1255 = vmul.f32 %v1227, 1.442695
        %v1256 = vpow.pop %v1255
        %v1257 = vmul.f32 %v1228, 1.442695
        %v1258 = vpow.pop %v1257
        %v1259 = vmul.f32 %v1229, 1.442695
        %v1260 = vpow.pop %v1259
        %v1261 = vmul.f32 %v1230, 1.442695
        %v1262 = vpow.pop %v1261
        %v1263 = vmul.f32 %v1231, 1.442695
        %v1264 = vpow.pop %v1263
        %v1265 = vmul.f32 %v1232, 1.442695
        %v1266 = vpow.pop %v1265
        %v1267 = vmul.f32 %v1233, 1.442695
        %v1268 = vpow.pop %v1267
        %v1269 = vmul.f32 %v1234, 1.442695
        %v1270 = vpow.pop %v1269
        %v1271 = vmul.f32 %v1235, 1.442695
        %v1272 = vpow.pop %v1271
        %v1273 = vmul.f32 %v1236, 1.442695
        %v1274 = vpow.pop %v1273
        %v1275 = vmul.f32 %v1237, 1.442695
        %v1276 = vpow.pop %v1275
        %v1277 = vmul.f32 %v1238, 1.442695
        %v1278 = vpow.pop %v1277
        %v1279 = vmul.f32 %v1239, 1.442695
        %v1280 = vpow.pop %v1279
        %v1281 = vmul.f32 %v1240, 1.442695
        %v1282 = vpow.pop %v1281
        %v1283 = vmul.f32 %v1241, 1.442695
        %v1284 = vpow.pop %v1283
        %v1285 = vmul.f32 %v1242, 1.442695
        %v1286 = vpow.pop %v1285
        %v1287 = vmul.f32 %v1243, 1.442695
        %v1288 = vpow.pop %v1287
        %v1289 = vmul.f32 %v1244, 1.442695
        %v1290 = vpow.pop %v1289
        %v1291 = vmul.f32 %v1245, 1.442695
        %v1292 = vpow.pop %v1291
        %v1293 = vmul.f32 %v1246, 1.442695
        %v1294 = vpow.pop %v1293
        %v1295 = vadd.f32 %v1248, 1.0
        %v1296 = vadd.f32 %v1250, 1.0
        %v1297 = vadd.f32 %v1252, 1.0
        %v1298 = vadd.f32 %v1254, 1.0
        %v1299 = vadd.f32 %v1256, 1.0
        %v1300 = vadd.f32 %v1258, 1.0
        %v1301 = vadd.f32 %v1260, 1.0
        %v1302 = vadd.f32 %v1262, 1.0
        %v1303 = vadd.f32 %v1264, 1.0
        %v1304 = vadd.f32 %v1266, 1.0
        %v1305 = vadd.f32 %v1268, 1.0
        %v1306 = vadd.f32 %v1270, 1.0
        %v1307 = vadd.f32 %v1272, 1.0
        %v1308 = vadd.f32 %v1274, 1.0
        %v1309 = vadd.f32 %v1276, 1.0
        %v1310 = vadd.f32 %v1278, 1.0
        %v1311 = vadd.f32 %v1280, 1.0
        %v1312 = vadd.f32 %v1282, 1.0
        %v1313 = vadd.f32 %v1284, 1.0
        %v1314 = vadd.f32 %v1286, 1.0
        %v1315 = vadd.f32 %v1288, 1.0
        %v1316 = vadd.f32 %v1290, 1.0
        %v1317 = vadd.f32 %v1292, 1.0
        %v1318 = vadd.f32 %v1294, 1.0
        %v1319 = vrcp.pop %v1295
        %v1320 = vmul.f32 %v1295, %v1319
        %v1321 = vsub.f32 1.0, %v1320
        %v1322 = vmul.f32 %v1319, %v1321
        %v1323 = vadd.f32 %v1319, %v1322
        %vm1324 = vweird.f32 %v1295
        %vm1325 = vweird.f32 %v1319
        %vm1326 = vmor %vm1324, %vm1325
        %v1327 = vsel %vm1326, %v1319, %v1323
        %v1328 = vand.u32 2147483647, %v1295
        %vm1329 = vcmp.eq.f32.partialorder %v1328, 8.507059e+37
        %v1330 = vand.u32 %v1295, 2147483648
        %v1331 = vor.u32 1.1754944e-38, %v1330
        %v1332 = vsel %vm1329, %v1331, %v1327
        %v1333 = vmul.f32 1.0, %v1332
        %v1334 = vrcp.pop %v1296
        %v1335 = vmul.f32 %v1296, %v1334
        %v1336 = vsub.f32 1.0, %v1335
        %v1337 = vmul.f32 %v1334, %v1336
        %v1338 = vadd.f32 %v1334, %v1337
        %vm1339 = vweird.f32 %v1296
        %vm1340 = vweird.f32 %v1334
        %vm1341 = vmor %vm1339, %vm1340
        %v1342 = vsel %vm1341, %v1334, %v1338
        %v1343 = vand.u32 2147483647, %v1296
        %vm1344 = vcmp.eq.f32.partialorder %v1343, 8.507059e+37
        %v1345 = vand.u32 %v1296, 2147483648
        %v1346 = vor.u32 1.1754944e-38, %v1345
        %v1347 = vsel %vm1344, %v1346, %v1342
        %v1348 = vmul.f32 1.0, %v1347
        %v1349 = vrcp.pop %v1297
        %v1350 = vmul.f32 %v1297, %v1349
        %v1351 = vsub.f32 1.0, %v1350
        %v1352 = vmul.f32 %v1349, %v1351
        %v1353 = vadd.f32 %v1349, %v1352
        %vm1354 = vweird.f32 %v1297
        %vm1355 = vweird.f32 %v1349
        %vm1356 = vmor %vm1354, %vm1355
        %v1357 = vsel %vm1356, %v1349, %v1353
        %v1358 = vand.u32 2147483647, %v1297
        %vm1359 = vcmp.eq.f32.partialorder %v1358, 8.507059e+37
        %v1360 = vand.u32 %v1297, 2147483648
        %v1361 = vor.u32 1.1754944e-38, %v1360
        %v1362 = vsel %vm1359, %v1361, %v1357
        %v1363 = vmul.f32 1.0, %v1362
        %v1364 = vrcp.pop %v1298
        %v1365 = vmul.f32 %v1298, %v1364
        %v1366 = vsub.f32 1.0, %v1365
        %v1367 = vmul.f32 %v1364, %v1366
        %v1368 = vadd.f32 %v1364, %v1367
        %vm1369 = vweird.f32 %v1298
        %vm1370 = vweird.f32 %v1364
        %vm1371 = vmor %vm1369, %vm1370
        %v1372 = vsel %vm1371, %v1364, %v1368
        %v1373 = vand.u32 2147483647, %v1298
        %vm1374 = vcmp.eq.f32.partialorder %v1373, 8.507059e+37
        %v1375 = vand.u32 %v1298, 2147483648
        %v1376 = vor.u32 1.1754944e-38, %v1375
        %v1377 = vsel %vm1374, %v1376, %v1372
        %v1378 = vmul.f32 1.0, %v1377
        %v1379 = vrcp.pop %v1299
        %v1380 = vmul.f32 %v1299, %v1379
        %v1381 = vsub.f32 1.0, %v1380
        %v1382 = vmul.f32 %v1379, %v1381
        %v1383 = vadd.f32 %v1379, %v1382
        %vm1384 = vweird.f32 %v1299
        %vm1385 = vweird.f32 %v1379
        %vm1386 = vmor %vm1384, %vm1385
        %v1387 = vsel %vm1386, %v1379, %v1383
        %v1388 = vand.u32 2147483647, %v1299
        %vm1389 = vcmp.eq.f32.partialorder %v1388, 8.507059e+37
        %v1390 = vand.u32 %v1299, 2147483648
        %v1391 = vor.u32 1.1754944e-38, %v1390
        %v1392 = vsel %vm1389, %v1391, %v1387
        %v1393 = vmul.f32 1.0, %v1392
        %v1394 = vrcp.pop %v1300
        %v1395 = vmul.f32 %v1300, %v1394
        %v1396 = vsub.f32 1.0, %v1395
        %v1397 = vmul.f32 %v1394, %v1396
        %v1398 = vadd.f32 %v1394, %v1397
        %vm1399 = vweird.f32 %v1300
        %vm1400 = vweird.f32 %v1394
        %vm1401 = vmor %vm1399, %vm1400
        %v1402 = vsel %vm1401, %v1394, %v1398
        %v1403 = vand.u32 2147483647, %v1300
        %vm1404 = vcmp.eq.f32.partialorder %v1403, 8.507059e+37
        %v1405 = vand.u32 %v1300, 2147483648
        %v1406 = vor.u32 1.1754944e-38, %v1405
        %v1407 = vsel %vm1404, %v1406, %v1402
        %v1408 = vmul.f32 1.0, %v1407
        %v1409 = vrcp.pop %v1301
        %v1410 = vmul.f32 %v1301, %v1409
        %v1411 = vsub.f32 1.0, %v1410
        %v1412 = vmul.f32 %v1409, %v1411
        %v1413 = vadd.f32 %v1409, %v1412
        %vm1414 = vweird.f32 %v1301
        %vm1415 = vweird.f32 %v1409
        %vm1416 = vmor %vm1414, %vm1415
        %v1417 = vsel %vm1416, %v1409, %v1413
        %v1418 = vand.u32 2147483647, %v1301
        %vm1419 = vcmp.eq.f32.partialorder %v1418, 8.507059e+37
        %v1420 = vand.u32 %v1301, 2147483648
        %v1421 = vor.u32 1.1754944e-38, %v1420
        %v1422 = vsel %vm1419, %v1421, %v1417
        %v1423 = vmul.f32 1.0, %v1422
        %v1424 = vrcp.pop %v1302
        %v1425 = vmul.f32 %v1302, %v1424
        %v1426 = vsub.f32 1.0, %v1425
        %v1427 = vmul.f32 %v1424, %v1426
        %v1428 = vadd.f32 %v1424, %v1427
        %vm1429 = vweird.f32 %v1302
        %vm1430 = vweird.f32 %v1424
        %vm1431 = vmor %vm1429, %vm1430
        %v1432 = vsel %vm1431, %v1424, %v1428
        %v1433 = vand.u32 2147483647, %v1302
        %vm1434 = vcmp.eq.f32.partialorder %v1433, 8.507059e+37
        %v1435 = vand.u32 %v1302, 2147483648
        %v1436 = vor.u32 1.1754944e-38, %v1435
        %v1437 = vsel %vm1434, %v1436, %v1432
        %v1438 = vmul.f32 1.0, %v1437
        %v1439 = vrcp.pop %v1303
        %v1440 = vmul.f32 %v1303, %v1439
        %v1441 = vsub.f32 1.0, %v1440
        %v1442 = vmul.f32 %v1439, %v1441
        %v1443 = vadd.f32 %v1439, %v1442
        %vm1444 = vweird.f32 %v1303
        %vm1445 = vweird.f32 %v1439
        %vm1446 = vmor %vm1444, %vm1445
        %v1447 = vsel %vm1446, %v1439, %v1443
        %v1448 = vand.u32 2147483647, %v1303
        %vm1449 = vcmp.eq.f32.partialorder %v1448, 8.507059e+37
        %v1450 = vand.u32 %v1303, 2147483648
        %v1451 = vor.u32 1.1754944e-38, %v1450
        %v1452 = vsel %vm1449, %v1451, %v1447
        %v1453 = vmul.f32 1.0, %v1452
        %v1454 = vrcp.pop %v1304
        %v1455 = vmul.f32 %v1304, %v1454
        %v1456 = vsub.f32 1.0, %v1455
        %v1457 = vmul.f32 %v1454, %v1456
        %v1458 = vadd.f32 %v1454, %v1457
        %vm1459 = vweird.f32 %v1304
        %vm1460 = vweird.f32 %v1454
        %vm1461 = vmor %vm1459, %vm1460
        %v1462 = vsel %vm1461, %v1454, %v1458
        %v1463 = vand.u32 2147483647, %v1304
        %vm1464 = vcmp.eq.f32.partialorder %v1463, 8.507059e+37
        %v1465 = vand.u32 %v1304, 2147483648
        %v1466 = vor.u32 1.1754944e-38, %v1465
        %v1467 = vsel %vm1464, %v1466, %v1462
        %v1468 = vmul.f32 1.0, %v1467
        %v1469 = vrcp.pop %v1305
        %v1470 = vmul.f32 %v1305, %v1469
        %v1471 = vsub.f32 1.0, %v1470
        %v1472 = vmul.f32 %v1469, %v1471
        %v1473 = vadd.f32 %v1469, %v1472
        %vm1474 = vweird.f32 %v1305
        %vm1475 = vweird.f32 %v1469
        %vm1476 = vmor %vm1474, %vm1475
        %v1477 = vsel %vm1476, %v1469, %v1473
        %v1478 = vand.u32 2147483647, %v1305
        %vm1479 = vcmp.eq.f32.partialorder %v1478, 8.507059e+37
        %v1480 = vand.u32 %v1305, 2147483648
        %v1481 = vor.u32 1.1754944e-38, %v1480
        %v1482 = vsel %vm1479, %v1481, %v1477
        %v1483 = vmul.f32 1.0, %v1482
        %v1484 = vrcp.pop %v1306
        %v1485 = vmul.f32 %v1306, %v1484
        %v1486 = vsub.f32 1.0, %v1485
        %v1487 = vmul.f32 %v1484, %v1486
        %v1488 = vadd.f32 %v1484, %v1487
        %vm1489 = vweird.f32 %v1306
        %vm1490 = vweird.f32 %v1484
        %vm1491 = vmor %vm1489, %vm1490
        %v1492 = vsel %vm1491, %v1484, %v1488
        %v1493 = vand.u32 2147483647, %v1306
        %vm1494 = vcmp.eq.f32.partialorder %v1493, 8.507059e+37
        %v1495 = vand.u32 %v1306, 2147483648
        %v1496 = vor.u32 1.1754944e-38, %v1495
        %v1497 = vsel %vm1494, %v1496, %v1492
        %v1498 = vmul.f32 1.0, %v1497
        %v1499 = vrcp.pop %v1307
        %v1500 = vmul.f32 %v1307, %v1499
        %v1501 = vsub.f32 1.0, %v1500
        %v1502 = vmul.f32 %v1499, %v1501
        %v1503 = vadd.f32 %v1499, %v1502
        %vm1504 = vweird.f32 %v1307
        %vm1505 = vweird.f32 %v1499
        %vm1506 = vmor %vm1504, %vm1505
        %v1507 = vsel %vm1506, %v1499, %v1503
        %v1508 = vand.u32 2147483647, %v1307
        %vm1509 = vcmp.eq.f32.partialorder %v1508, 8.507059e+37
        %v1510 = vand.u32 %v1307, 2147483648
        %v1511 = vor.u32 1.1754944e-38, %v1510
        %v1512 = vsel %vm1509, %v1511, %v1507
        %v1513 = vmul.f32 1.0, %v1512
        %v1514 = vrcp.pop %v1308
        %v1515 = vmul.f32 %v1308, %v1514
        %v1516 = vsub.f32 1.0, %v1515
        %v1517 = vmul.f32 %v1514, %v1516
        %v1518 = vadd.f32 %v1514, %v1517
        %vm1519 = vweird.f32 %v1308
        %vm1520 = vweird.f32 %v1514
        %vm1521 = vmor %vm1519, %vm1520
        %v1522 = vsel %vm1521, %v1514, %v1518
        %v1523 = vand.u32 2147483647, %v1308
        %vm1524 = vcmp.eq.f32.partialorder %v1523, 8.507059e+37
        %v1525 = vand.u32 %v1308, 2147483648
        %v1526 = vor.u32 1.1754944e-38, %v1525
        %v1527 = vsel %vm1524, %v1526, %v1522
        %v1528 = vmul.f32 1.0, %v1527
        %v1529 = vrcp.pop %v1309
        %v1530 = vmul.f32 %v1309, %v1529
        %v1531 = vsub.f32 1.0, %v1530
        %v1532 = vmul.f32 %v1529, %v1531
        %v1533 = vadd.f32 %v1529, %v1532
        %vm1534 = vweird.f32 %v1309
        %vm1535 = vweird.f32 %v1529
        %vm1536 = vmor %vm1534, %vm1535
        %v1537 = vsel %vm1536, %v1529, %v1533
        %v1538 = vand.u32 2147483647, %v1309
        %vm1539 = vcmp.eq.f32.partialorder %v1538, 8.507059e+37
        %v1540 = vand.u32 %v1309, 2147483648
        %v1541 = vor.u32 1.1754944e-38, %v1540
        %v1542 = vsel %vm1539, %v1541, %v1537
        %v1543 = vmul.f32 1.0, %v1542
        %v1544 = vrcp.pop %v1310
        %v1545 = vmul.f32 %v1310, %v1544
        %v1546 = vsub.f32 1.0, %v1545
        %v1547 = vmul.f32 %v1544, %v1546
        %v1548 = vadd.f32 %v1544, %v1547
        %vm1549 = vweird.f32 %v1310
        %vm1550 = vweird.f32 %v1544
        %vm1551 = vmor %vm1549, %vm1550
        %v1552 = vsel %vm1551, %v1544, %v1548
        %v1553 = vand.u32 2147483647, %v1310
        %vm1554 = vcmp.eq.f32.partialorder %v1553, 8.507059e+37
        %v1555 = vand.u32 %v1310, 2147483648
        %v1556 = vor.u32 1.1754944e-38, %v1555
        %v1557 = vsel %vm1554, %v1556, %v1552
        %v1558 = vmul.f32 1.0, %v1557
        %v1559 = vrcp.pop %v1311
        %v1560 = vmul.f32 %v1311, %v1559
        %v1561 = vsub.f32 1.0, %v1560
        %v1562 = vmul.f32 %v1559, %v1561
        %v1563 = vadd.f32 %v1559, %v1562
        %vm1564 = vweird.f32 %v1311
        %vm1565 = vweird.f32 %v1559
        %vm1566 = vmor %vm1564, %vm1565
        %v1567 = vsel %vm1566, %v1559, %v1563
        %v1568 = vand.u32 2147483647, %v1311
        %vm1569 = vcmp.eq.f32.partialorder %v1568, 8.507059e+37
        %v1570 = vand.u32 %v1311, 2147483648
        %v1571 = vor.u32 1.1754944e-38, %v1570
        %v1572 = vsel %vm1569, %v1571, %v1567
        %v1573 = vmul.f32 1.0, %v1572
        %v1574 = vrcp.pop %v1312
        %v1575 = vmul.f32 %v1312, %v1574
        %v1576 = vsub.f32 1.0, %v1575
        %v1577 = vmul.f32 %v1574, %v1576
        %v1578 = vadd.f32 %v1574, %v1577
        %vm1579 = vweird.f32 %v1312
        %vm1580 = vweird.f32 %v1574
        %vm1581 = vmor %vm1579, %vm1580
        %v1582 = vsel %vm1581, %v1574, %v1578
        %v1583 = vand.u32 2147483647, %v1312
        %vm1584 = vcmp.eq.f32.partialorder %v1583, 8.507059e+37
        %v1585 = vand.u32 %v1312, 2147483648
        %v1586 = vor.u32 1.1754944e-38, %v1585
        %v1587 = vsel %vm1584, %v1586, %v1582
        %v1588 = vmul.f32 1.0, %v1587
        %v1589 = vrcp.pop %v1313
        %v1590 = vmul.f32 %v1313, %v1589
        %v1591 = vsub.f32 1.0, %v1590
        %v1592 = vmul.f32 %v1589, %v1591
        %v1593 = vadd.f32 %v1589, %v1592
        %vm1594 = vweird.f32 %v1313
        %vm1595 = vweird.f32 %v1589
        %vm1596 = vmor %vm1594, %vm1595
        %v1597 = vsel %vm1596, %v1589, %v1593
        %v1598 = vand.u32 2147483647, %v1313
        %vm1599 = vcmp.eq.f32.partialorder %v1598, 8.507059e+37
        %v1600 = vand.u32 %v1313, 2147483648
        %v1601 = vor.u32 1.1754944e-38, %v1600
        %v1602 = vsel %vm1599, %v1601, %v1597
        %v1603 = vmul.f32 1.0, %v1602
        %v1604 = vrcp.pop %v1314
        %v1605 = vmul.f32 %v1314, %v1604
        %v1606 = vsub.f32 1.0, %v1605
        %v1607 = vmul.f32 %v1604, %v1606
        %v1608 = vadd.f32 %v1604, %v1607
        %vm1609 = vweird.f32 %v1314
        %vm1610 = vweird.f32 %v1604
        %vm1611 = vmor %vm1609, %vm1610
        %v1612 = vsel %vm1611, %v1604, %v1608
        %v1613 = vand.u32 2147483647, %v1314
        %vm1614 = vcmp.eq.f32.partialorder %v1613, 8.507059e+37
        %v1615 = vand.u32 %v1314, 2147483648
        %v1616 = vor.u32 1.1754944e-38, %v1615
        %v1617 = vsel %vm1614, %v1616, %v1612
        %v1618 = vmul.f32 1.0, %v1617
        %v1619 = vrcp.pop %v1315
        %v1620 = vmul.f32 %v1315, %v1619
        %v1621 = vsub.f32 1.0, %v1620
        %v1622 = vmul.f32 %v1619, %v1621
        %v1623 = vadd.f32 %v1619, %v1622
        %vm1624 = vweird.f32 %v1315
        %vm1625 = vweird.f32 %v1619
        %vm1626 = vmor %vm1624, %vm1625
        %v1627 = vsel %vm1626, %v1619, %v1623
        %v1628 = vand.u32 2147483647, %v1315
        %vm1629 = vcmp.eq.f32.partialorder %v1628, 8.507059e+37
        %v1630 = vand.u32 %v1315, 2147483648
        %v1631 = vor.u32 1.1754944e-38, %v1630
        %v1632 = vsel %vm1629, %v1631, %v1627
        %v1633 = vmul.f32 1.0, %v1632
        %v1634 = vrcp.pop %v1316
        %v1635 = vmul.f32 %v1316, %v1634
        %v1636 = vsub.f32 1.0, %v1635
        %v1637 = vmul.f32 %v1634, %v1636
        %v1638 = vadd.f32 %v1634, %v1637
        %vm1639 = vweird.f32 %v1316
        %vm1640 = vweird.f32 %v1634
        %vm1641 = vmor %vm1639, %vm1640
        %v1642 = vsel %vm1641, %v1634, %v1638
        %v1643 = vand.u32 2147483647, %v1316
        %vm1644 = vcmp.eq.f32.partialorder %v1643, 8.507059e+37
        %v1645 = vand.u32 %v1316, 2147483648
        %v1646 = vor.u32 1.1754944e-38, %v1645
        %v1647 = vsel %vm1644, %v1646, %v1642
        %v1648 = vmul.f32 1.0, %v1647
        %v1649 = vrcp.pop %v1317
        %v1650 = vmul.f32 %v1317, %v1649
        %v1651 = vsub.f32 1.0, %v1650
        %v1652 = vmul.f32 %v1649, %v1651
        %v1653 = vadd.f32 %v1649, %v1652
        %vm1654 = vweird.f32 %v1317
        %vm1655 = vweird.f32 %v1649
        %vm1656 = vmor %vm1654, %vm1655
        %v1657 = vsel %vm1656, %v1649, %v1653
        %v1658 = vand.u32 2147483647, %v1317
        %vm1659 = vcmp.eq.f32.partialorder %v1658, 8.507059e+37
        %v1660 = vand.u32 %v1317, 2147483648
        %v1661 = vor.u32 1.1754944e-38, %v1660
        %v1662 = vsel %vm1659, %v1661, %v1657
        %v1663 = vmul.f32 1.0, %v1662
        %v1664 = vrcp.pop %v1318
        %v1665 = vmul.f32 %v1318, %v1664
        %v1666 = vsub.f32 1.0, %v1665
        %v1667 = vmul.f32 %v1664, %v1666
        %v1668 = vadd.f32 %v1664, %v1667
        %vm1669 = vweird.f32 %v1318
        %vm1670 = vweird.f32 %v1664
        %vm1671 = vmor %vm1669, %vm1670
        %v1672 = vsel %vm1671, %v1664, %v1668
        %v1673 = vand.u32 2147483647, %v1318
        %vm1674 = vcmp.eq.f32.partialorder %v1673, 8.507059e+37
        %v1675 = vand.u32 %v1318, 2147483648
        %v1676 = vor.u32 1.1754944e-38, %v1675
        %v1677 = vsel %vm1674, %v1676, %v1672
        %v1678 = vmul.f32 1.0, %v1677
        %v1679 = vtanh.pop %v1067
        %v1680 = vtanh.pop %v1214
        %v1681 = vtanh.pop %v1069
        %v1682 = vtanh.pop %v1216
        %v1683 = vtanh.pop %v1072
        %v1684 = vtanh.pop %v1219
        %v1685 = vtanh.pop %v1074
        %v1686 = vtanh.pop %v1221
        %v1687 = vld [vmem:[%s342] sm:$0xff]
        %v1688 = vld [vmem:[%s342 + $0x8] sm:$0xff]
        %v1689 = vld [vmem:[%s342 + $0x10] sm:$0xff]
        %v1690 = vld [vmem:[%s342 + $0x18] sm:$0xff]
        %v1691 = vld [vmem:[%s342 + $0x20] sm:$0xff]
        %v1692 = vld [vmem:[%s342 + $0x28] sm:$0xff]
        %v1693 = vld [vmem:[%s342 + $0x30] sm:$0xff]
        %v1694 = vld [vmem:[%s342 + $0x38] sm:$0xff]
        %v1695 = vmul.f32 %v1453, %v1687
        %v1696 = vmul.f32 %v1468, %v1688
        %v1697 = vmul.f32 %v1483, %v1689
        %v1698 = vmul.f32 %v1498, %v1690
        %v1699 = vmul.f32 %v1513, %v1691
        %v1700 = vmul.f32 %v1528, %v1692
        %v1701 = vmul.f32 %v1543, %v1693
        %v1702 = vmul.f32 %v1558, %v1694
        %v1703 = vmul.f32 %v1333, %v1679
        %v1704 = vmul.f32 %v1348, %v1680
        %v1705 = vmul.f32 %v1363, %v1681
        %v1706 = vmul.f32 %v1378, %v1682
        %v1707 = vmul.f32 %v1393, %v1683
        %v1708 = vmul.f32 %v1408, %v1684
        %v1709 = vmul.f32 %v1423, %v1685
        %v1710 = vmul.f32 %v1438, %v1686
        %v1711 = vadd.f32 %v1695, %v1703
        %v1712 = vadd.f32 %v1696, %v1704
        %v1713 = vadd.f32 %v1697, %v1705
        %v1714 = vadd.f32 %v1698, %v1706
        %v1715 = vadd.f32 %v1699, %v1707
        %v1716 = vadd.f32 %v1700, %v1708
        %v1717 = vadd.f32 %v1701, %v1709
        %v1718 = vadd.f32 %v1702, %v1710
        %v1719 = vtanh.pop %v1711
        %v1720 = vtanh.pop %v1712
        %v1721 = vtanh.pop %v1713
        %v1722 = vtanh.pop %v1714
        %v1723 = vtanh.pop %v1715
        %v1724 = vtanh.pop %v1716
        %v1725 = vtanh.pop %v1717
        %v1726 = vtanh.pop %v1718
        %v1727 = vld [vmem:[%s4] sm:$0xff]
        %v1728 = vld [vmem:[%s4 + $0x8] sm:$0xff]
        %v1729 = vld [vmem:[%s4 + $0x10] sm:$0xff]
        %v1730 = vld [vmem:[%s4 + $0x18] sm:$0xff]
        %1732 = vset.pattern.permute.xlu0 0
        %1733 = vperm.xlu0 %1732, %v1727
        %v1734 = vpop.permute.xlu0 %1733
        %1737 = vset.pattern.permute.xlu0 0
        %1738 = vperm.xlu0 %1737, %v1728
        %v1739 = vpop.permute.xlu0 %1738
        %1742 = vset.pattern.permute.xlu0 0
        %1743 = vperm.xlu0 %1742, %v1729
        %v1744 = vpop.permute.xlu0 %1743
        %1747 = vset.pattern.permute.xlu0 0
        %1748 = vperm.xlu0 %1747, %v1730
        %v1749 = vpop.permute.xlu0 %1748
        %v1751 = vmul.f32 %v1719, %v1734
        %v1752 = vmul.f32 %v1720, %v1734
        %v1753 = vmul.f32 %v1721, %v1739
        %v1754 = vmul.f32 %v1722, %v1739
        %v1755 = vmul.f32 %v1723, %v1744
        %v1756 = vmul.f32 %v1724, %v1744
        %v1757 = vmul.f32 %v1725, %v1749
        %v1758 = vmul.f32 %v1726, %v1749
        %v1759 = vld [vmem:[%s5] sm:$0xff]
        %v1760 = vld [vmem:[%s5 + $0x8] sm:$0xff]
        %v1761 = vld [vmem:[%s5 + $0x10] sm:$0xff]
        %v1762 = vld [vmem:[%s5 + $0x18] sm:$0xff]
        %1764 = vset.pattern.permute.xlu0 0
        %1765 = vperm.xlu0 %1764, %v1759
        %v1766 = vpop.permute.xlu0 %1765
        %1769 = vset.pattern.permute.xlu0 0
        %1770 = vperm.xlu0 %1769, %v1760
        %v1771 = vpop.permute.xlu0 %1770
        %1774 = vset.pattern.permute.xlu0 0
        %1775 = vperm.xlu0 %1774, %v1761
        %v1776 = vpop.permute.xlu0 %1775
        %1779 = vset.pattern.permute.xlu0 0
        %1780 = vperm.xlu0 %1779, %v1762
        %v1781 = vpop.permute.xlu0 %1780
        %v1783 = vadd.f32 %v1751, %v1766
        %v1784 = vadd.f32 %v1752, %v1766
        %v1785 = vadd.f32 %v1753, %v1771
        %v1786 = vadd.f32 %v1754, %v1771
        %v1787 = vadd.f32 %v1755, %v1776
        %v1788 = vadd.f32 %v1756, %v1776
        %v1789 = vadd.f32 %v1757, %v1781
        %v1790 = vadd.f32 %v1758, %v1781
        %v1791 = vmul.f32 %v1573, %v1783
        %v1792 = vmul.f32 %v1588, %v1784
        %v1793 = vmul.f32 %v1603, %v1785
        %v1794 = vmul.f32 %v1618, %v1786
        %v1795 = vmul.f32 %v1633, %v1787
        %v1796 = vmul.f32 %v1648, %v1788
        %v1797 = vmul.f32 %v1663, %v1789
        %v1798 = vmul.f32 %v1678, %v1790
        %1799 = vst [vmem:[%s380] sm:$0xff] %v1711
        %1800 = vst [vmem:[%s380 + $0x8] sm:$0xff] %v1712
        %1801 = vst [vmem:[%s380 + $0x10] sm:$0xff] %v1713
        %1802 = vst [vmem:[%s380 + $0x18] sm:$0xff] %v1714
        %1803 = vst [vmem:[%s380 + $0x20] sm:$0xff] %v1715
        %1804 = vst [vmem:[%s380 + $0x28] sm:$0xff] %v1716
        %1805 = vst [vmem:[%s380 + $0x30] sm:$0xff] %v1717
        %1806 = vst [vmem:[%s380 + $0x38] sm:$0xff] %v1718
        %1807 = vst [vmem:[%s373] sm:$0xff] %v1791
        %1808 = vst [vmem:[%s373 + $0x8] sm:$0xff] %v1792
        %1809 = vst [vmem:[%s373 + $0x10] sm:$0xff] %v1793
        %1810 = vst [vmem:[%s373 + $0x18] sm:$0xff] %v1794
        %1811 = vst [vmem:[%s373 + $0x20] sm:$0xff] %v1795
        %1812 = vst [vmem:[%s373 + $0x28] sm:$0xff] %v1796
        %1813 = vst [vmem:[%s373 + $0x30] sm:$0xff] %v1797
        %1814 = vst [vmem:[%s373 + $0x38] sm:$0xff] %v1798
        %s1815 = sand.u32 %s173, 1
        %s1816 = scalar_lea.sflag [#allocation4], %s1815
        %s1817 = sand.u32 %s173, 1
        %s1818 = smul.addr %s1817, 64
        %s1819 = scalar_lea.vmem [#allocation8], %s1818
        %s1820 = sand.u32 %s199, 1
        %s1821 = scalar_lea.sflag [#allocation10], %s1820
        %s1822 = sand.u32 %s199, 1
        %s1823 = smul.addr %s1822, 64
        %s1824 = scalar_lea.vmem [#allocation9], %s1823
        // Predicated region
        $region76: #{tpu_custom_call.1} parent=62 // pred_check
          %p1825 = pneg %p183
        $region77: #{tpu_custom_call.1} parent=62 // pred_check_branch
          %1827 = sbr.rel (%p1825) target = $region79
        $region78: #{tpu_custom_call.1} parent=62 // pred_region
          %s1828 = smul.u32 2, %s29
          %1830 = vsyncadd %s1816, 0
          %s1831 = smul.addr %s1828, 8
          %s1832 = scalar_lea.hbm %s6, %s1831
          %s1833 = sshll.u32 %s1819, 4
          %s1834 = int_to_ptr.vmem [resolvable:$true] %s1833
          %s1835 = sshll.u32 %s1832, 4
          %s1836 = int_to_ptr.hbm [resolvable:$true] %s1835
          %1841 = dma.vmem_to_hbm [thread:$0]  %s1834, 1024, %s1836, %s1816, 256, 512, 16
        $region79: #{tpu_custom_call.1} parent=62 // pred_fallthru
          _
        // Predicated region
        $region80: #{tpu_custom_call.1} parent=62 // pred_check
          %p1842 = pneg %p209
        $region81: #{tpu_custom_call.1} parent=62 // pred_check_branch
          %1844 = sbr.rel (%p1842) target = $region83
        $region82: #{tpu_custom_call.1} parent=62 // pred_region
          %s1845 = smul.u32 2, %s29
          %1847 = vsyncadd %s1821, 0
          %s1848 = smul.addr %s1845, 8
          %s1849 = scalar_lea.hbm %s7, %s1848
          %s1850 = sshll.u32 %s1824, 4
          %s1851 = int_to_ptr.vmem [resolvable:$true] %s1850
          %s1852 = sshll.u32 %s1849, 4
          %s1853 = int_to_ptr.hbm [resolvable:$true] %s1852
          %1858 = dma.vmem_to_hbm [thread:$0]  %s1851, 1024, %s1853, %s1821, 256, 512, 16
        $region83: #{tpu_custom_call.1} parent=62 // pred_fallthru
          _
      $region63: #{tpu_custom_call.1} parent=5 // pred_fallthru
        _
      %p1859 = scmp.le.s32.totalorder 2, %s24
      // Predicated region
      $region84: #{tpu_custom_call.1} parent=5 // pred_check
        %p1860 = pneg %p1859
      $region85: #{tpu_custom_call.1} parent=5 // pred_check_branch
        %1862 = sbr.rel (%p1860) target = $region87
      $region86: #{tpu_custom_call.1} parent=5 // pred_region
        %s1863 = ssub.s32 %s24, 2
        // Predicated region
        $region88: #{tpu_custom_call.1} parent=86 // pred_check
          %p1864 = pneg %p189
        $region89: #{tpu_custom_call.1} parent=86 // pred_check_branch
          %1866 = sbr.rel (%p1864) target = $region91
        $region90: #{tpu_custom_call.1} parent=86 // pred_region
          %s1867 = sand.u32 %s174, 1
          %s1868 = scalar_lea.sflag [#allocation4], %s1867
          %s1869 = sand.u32 %s174, 1
          %s1870 = smul.addr %s1869, 64
          %s1871 = scalar_lea.vmem [#allocation8], %s1870
          %1873 = dma.done %s1868, 1024
        $region91: #{tpu_custom_call.1} parent=86 // pred_fallthru
          _
        // Predicated region
        $region92: #{tpu_custom_call.1} parent=86 // pred_check
          %p1874 = pneg %p215
        $region93: #{tpu_custom_call.1} parent=86 // pred_check_branch
          %1876 = sbr.rel (%p1874) target = $region95
        $region94: #{tpu_custom_call.1} parent=86 // pred_region
          %s1877 = sand.u32 %s200, 1
          %s1878 = scalar_lea.sflag [#allocation10], %s1877
          %s1879 = sand.u32 %s200, 1
          %s1880 = smul.addr %s1879, 64
          %s1881 = scalar_lea.vmem [#allocation9], %s1880
          %1883 = dma.done %s1878, 1024
        $region95: #{tpu_custom_call.1} parent=86 // pred_fallthru
          _
      $region87: #{tpu_custom_call.1} parent=5 // pred_fallthru
        _
    $region6: #{tpu_custom_call.1} parent=1 // loop_footer
      %s28 = sadd.s32 1, %s24
    $region7: #{tpu_custom_call.1} parent=1 // loop_footer_branch
      %23 = sbr.rel target = $region3
    $region8: #{tpu_custom_call.1} parent=1 // loop_exit
      _
    %1884 = vsyncpa [#allocation3], 1
    %s1885 = scalar_lea.sflag [#allocation3], 1
    %1886 = vsyncpa %s1885, 1
    %1887 = vsyncpa [#allocation6], 1
    %1888 = vsyncpa [#allocation4], 1
    %s1889 = scalar_lea.sflag [#allocation4], 1
    %1890 = vsyncpa %s1889, 1
    %1891 = vsyncpa [#allocation10], 1
    %s1892 = scalar_lea.sflag [#allocation10], 1
    %1893 = vsyncpa %s1892, 1

</llo_original>
